<compile_context>
chip_gen: v7x
topology: tpu7x:2x2x1
jax: 0.10.0
libtpu: 0.0.40
codegen_flags: <defaults>
</compile_context>

<pallas_src>
import functools

import jax
import jax.numpy as jnp
from jax.experimental import pallas as pl
from jax.experimental.pallas import tpu as pltpu


def autoencoder_kernel(x_ref, w1_ref, b1_ref, w2_ref, b2_ref, y_ref):
    """One batch-tile of the full forward pass (both matmuls + activations)."""
    x = x_ref[...]                                                   # (TB, 784) bf16
    # Encoder: Linear(784 -> 200) + ReLU, f32 accumulation on the MXU.
    h = jnp.dot(x, w1_ref[...], preferred_element_type=jnp.float32)
    h = jnp.maximum(h + b1_ref[...], 0.0)                            # f32 bias/ReLU
    h = h.astype(w2_ref.dtype)                                       # bf16 for 2nd matmul
    # Decoder: Linear(200 -> 784) + Sigmoid.
    z = jnp.dot(h, w2_ref[...], preferred_element_type=jnp.float32)
    z = z + b2_ref[...]                                              # f32 bias
    # sigmoid(z) = 1 / (1 + exp(-z)); approx reciprocal (EUP) is well within
    # the bf16 output precision.
    y = pl.reciprocal(1.0 + jnp.exp(-z), approx=True)
    y_ref[...] = y.astype(y_ref.dtype)                               # bf16 out


def _is_v7x():
    try:
        return "v7" in jax.devices()[0].device_kind.lower()
    except Exception:
        return False


def _pick_tile_b(B, requested):
    """Batch tile: multiple of 16 (bf16 sublane packing), capped at the batch."""
    t = max(16, (int(requested) // 16) * 16)
    t = min(t, ((B + 15) // 16) * 16)
    # Only v7x has two TensorCores: aim for >= 2 parallel grid steps there.
    if _is_v7x() and B >= 32 and pl.cdiv(B, t) < 2:
        t = max(16, (pl.cdiv(B, 2) // 16) * 16)
    return t


@functools.partial(jax.jit, static_argnames=("tile_b",))
def autoencoder_forward(x, w1, b1, w2, b2, *, tile_b=None):
    """x: (B, 784). w1: (200, 784), b1: (200,), w2: (784, 200), b2: (784,)
    (PyTorch nn.Linear layout). Returns (B, 784) bfloat16."""
    B, D = x.shape
    H = w1.shape[0]
    io_dtype = jnp.bfloat16

    if tile_b is None:
        tile_b = 1024 if _is_v7x() else 512
    tile_b = _pick_tile_b(B, tile_b)
    grid_b = pl.cdiv(B, tile_b)

    # Pad only the hidden dim to a lane multiple (200 -> 256); x / y keep
    # their native 784-wide last dim (full-array block dim, no extra HBM pass).
    H_pad = pl.cdiv(H, 128) * 128

    xs = x.astype(io_dtype)
    w1t = jnp.zeros((D, H_pad), io_dtype).at[:, :H].set(w1.T.astype(io_dtype))
    w2t = jnp.zeros((H_pad, D), io_dtype).at[:H, :].set(w2.T.astype(io_dtype))
    b1p = jnp.zeros((1, H_pad), jnp.float32).at[0, :H].set(b1.astype(jnp.float32))
    b2p = b2.astype(jnp.float32).reshape(1, D)

    in_specs = [
        # batch tile of the input
        pl.BlockSpec((tile_b, D), lambda i: (i, 0)),
        # weights / biases: full arrays, resident across the grid
        pl.BlockSpec((D, H_pad), lambda i: (0, 0)),
        pl.BlockSpec((1, H_pad), lambda i: (0, 0)),
        pl.BlockSpec((H_pad, D), lambda i: (0, 0)),
        pl.BlockSpec((1, D), lambda i: (0, 0)),
    ]

    return pl.pallas_call(
        autoencoder_kernel,
        out_shape=jax.ShapeDtypeStruct((B, D), io_dtype),
        grid_spec=pltpu.PrefetchScalarGridSpec(
            num_scalar_prefetch=0,
            grid=(grid_b,),
            in_specs=in_specs,
            out_specs=pl.BlockSpec((tile_b, D), lambda i: (i, 0)),
        ),
        compiler_params=pltpu.CompilerParams(
            dimension_semantics=("parallel",),
        ),
    )(xs, w1t, b1p, w2t, b2p)


def init_params(key):
    """Deterministic init matching nn.Linear's default U(-1/sqrt(fan_in), 1/sqrt(fan_in))."""
    k1, k2, k3, k4 = jax.random.split(key, 4)
    bound1 = 1.0 / jnp.sqrt(784.0)
    bound2 = 1.0 / jnp.sqrt(200.0)
    w1 = jax.random.uniform(k1, (200, 784), jnp.float32, -bound1, bound1)
    b1 = jax.random.uniform(k2, (200,), jnp.float32, -bound1, bound1)
    w2 = jax.random.uniform(k3, (784, 200), jnp.float32, -bound2, bound2)
    b2 = jax.random.uniform(k4, (784,), jnp.float32, -bound2, bound2)
    return w1, b1, w2, b2


if __name__ == "__main__":
    key = jax.random.PRNGKey(0)
    k_x, k_p = jax.random.split(key)

    B = 16  # 784 = flattened 28x28 image, as the module implies
    x = jax.random.uniform(k_x, (B, 784), jnp.float32)  # "pixel" inputs in [0, 1)
    w1, b1, w2, b2 = init_params(k_p)

    y = autoencoder_forward(x, w1, b1, w2, b2)
    y = jax.block_until_ready(y)

    # Pure-JAX f32 reference (kernel streams bf16 in/out -> looser tolerance).
    h_ref = jnp.maximum(x @ w1.T + b1, 0.0)
    y_ref = jax.nn.sigmoid(h_ref @ w2.T + b2)
    assert y.shape == (B, 784)
    err = float(jnp.max(jnp.abs(y.astype(jnp.float32) - y_ref)))
    assert err < 2e-2, err

    print("KERNEL_OK")
</pallas_src>

<mosaic_0001>
module attributes {stable_mosaic.version = 11 : i64} {
  func.func @autoencoder_kernel(%arg0: i32, %arg1: memref<16x784xbf16, #tpu.memory_space<vmem>>, %arg2: memref<784x256xbf16, #tpu.memory_space<vmem>>, %arg3: memref<1x256xf32, #tpu.memory_space<vmem>>, %arg4: memref<256x784xbf16, #tpu.memory_space<vmem>>, %arg5: memref<1x784xf32, #tpu.memory_space<vmem>>, %arg6: memref<16x784xbf16, #tpu.memory_space<vmem>>) attributes {dimension_semantics = [#tpu.dimension_semantics<parallel>], iteration_bounds = array<i64: 1>, scalar_prefetch = 0 : i64, scratch_operands = 0 : i64, tpu.core_type = #tpu.core_type<tc>, window_params = [{transform_indices = @transform_0, window_bounds = array<i64: 16, 784>}, {pipeline_mode = #tpu.pipeline_mode<synchronous>, transform_indices = @transform_1, window_bounds = array<i64: 784, 256>}, {pipeline_mode = #tpu.pipeline_mode<synchronous>, transform_indices = @transform_2, window_bounds = array<i64: 1, 256>}, {pipeline_mode = #tpu.pipeline_mode<synchronous>, transform_indices = @transform_3, window_bounds = array<i64: 256, 784>}, {pipeline_mode = #tpu.pipeline_mode<synchronous>, transform_indices = @transform_4, window_bounds = array<i64: 1, 784>}, {transform_indices = @transform_5, window_bounds = array<i64: 16, 784>}]} {
    %c0 = arith.constant 0 : index
    %c0_0 = arith.constant 0 : index
    %0 = vector.load %arg1[%c0, %c0_0] : memref<16x784xbf16, #tpu.memory_space<vmem>>, vector<16x784xbf16>
    %c0_1 = arith.constant 0 : index
    %c0_2 = arith.constant 0 : index
    %1 = vector.load %arg2[%c0_1, %c0_2] : memref<784x256xbf16, #tpu.memory_space<vmem>>, vector<784x256xbf16>
    %cst = arith.constant dense<0.000000e+00> : vector<16x256xf32>
    %2 = tpu.matmul %0, %1, %cst {dimension_numbers = #tpu.dot_dimension_numbers<[1], [0], [0], [1], [0, 0, 1, 1], [], []>} : vector<16x784xbf16>, vector<784x256xbf16>, vector<16x256xf32> -> vector<16x256xf32>
    %c0_3 = arith.constant 0 : index
    %c0_4 = arith.constant 0 : index
    %3 = vector.load %arg3[%c0_3, %c0_4] : memref<1x256xf32, #tpu.memory_space<vmem>>, vector<1x256xf32>
    %4 = vector.broadcast %3 : vector<1x256xf32> to vector<16x256xf32>
    %5 = arith.addf %2, %4 : vector<16x256xf32>
    %cst_5 = arith.constant 0.000000e+00 : f32
    %6 = vector.broadcast %cst_5 : f32 to vector<16x256xf32>
    %7 = arith.maximumf %5, %6 : vector<16x256xf32>
    %8 = arith.truncf %7 : vector<16x256xf32> to vector<16x256xbf16>
    %c0_6 = arith.constant 0 : index
    %c0_7 = arith.constant 0 : index
    %9 = vector.load %arg4[%c0_6, %c0_7] : memref<256x784xbf16, #tpu.memory_space<vmem>>, vector<256x784xbf16>
    %cst_8 = arith.constant dense<0.000000e+00> : vector<16x784xf32>
    %10 = tpu.matmul %8, %9, %cst_8 {dimension_numbers = #tpu.dot_dimension_numbers<[1], [0], [0], [1], [0, 0, 1, 1], [], []>} : vector<16x256xbf16>, vector<256x784xbf16>, vector<16x784xf32> -> vector<16x784xf32>
    %c0_9 = arith.constant 0 : index
    %c0_10 = arith.constant 0 : index
    %11 = vector.load %arg5[%c0_9, %c0_10] : memref<1x784xf32, #tpu.memory_space<vmem>>, vector<1x784xf32>
    %12 = vector.broadcast %11 : vector<1x784xf32> to vector<16x784xf32>
    %13 = arith.addf %10, %12 : vector<16x784xf32>
    %cst_11 = arith.constant 0.000000e+00 : f32
    %14 = vector.broadcast %cst_11 : f32 to vector<16x784xf32>
    %15 = arith.subf %14, %13 : vector<16x784xf32>
    %16 = math.exp %15 : vector<16x784xf32>
    %cst_12 = arith.constant 1.000000e+00 : f32
    %17 = vector.broadcast %cst_12 : f32 to vector<16x784xf32>
    %18 = arith.addf %17, %16 : vector<16x784xf32>
    %19 = tpu.reciprocal %18 {approx = true} : vector<16x784xf32> -> vector<16x784xf32>
    %20 = arith.truncf %19 : vector<16x784xf32> to vector<16x784xbf16>
    %c0_13 = arith.constant 0 : index
    %c0_14 = arith.constant 0 : index
    %21 = vector.load %arg6[%c0_13, %c0_14] : memref<16x784xbf16, #tpu.memory_space<vmem>>, vector<16x784xbf16>
    tpu.vector_store %arg6[%c0_13, %c0_14], %20 {strides = array<i32>} : memref<16x784xbf16, #tpu.memory_space<vmem>>, vector<16x784xbf16>,
    return
  }
  func.func @transform_0(%arg0: i32) -> (i32, i32) {
    %c0_i32 = arith.constant 0 : i32
    %c0_i32_0 = arith.constant 0 : i32
    return %arg0, %c0_i32 : i32, i32
  }
  func.func @transform_1(%arg0: i32) -> (i32, i32) {
    %c0_i32 = arith.constant 0 : i32
    %c0_i32_0 = arith.constant 0 : i32
    %c0_i32_1 = arith.constant 0 : i32
    return %c0_i32, %c0_i32_0 : i32, i32
  }
  func.func @transform_2(%arg0: i32) -> (i32, i32) {
    %c0_i32 = arith.constant 0 : i32
    %c0_i32_0 = arith.constant 0 : i32
    %c0_i32_1 = arith.constant 0 : i32
    return %c0_i32, %c0_i32_0 : i32, i32
  }
  func.func @transform_3(%arg0: i32) -> (i32, i32) {
    %c0_i32 = arith.constant 0 : i32
    %c0_i32_0 = arith.constant 0 : i32
    %c0_i32_1 = arith.constant 0 : i32
    return %c0_i32, %c0_i32_0 : i32, i32
  }
  func.func @transform_4(%arg0: i32) -> (i32, i32) {
    %c0_i32 = arith.constant 0 : i32
    %c0_i32_0 = arith.constant 0 : i32
    %c0_i32_1 = arith.constant 0 : i32
    return %c0_i32, %c0_i32_0 : i32, i32
  }
  func.func @transform_5(%arg0: i32) -> (i32, i32) {
    %c0_i32 = arith.constant 0 : i32
    %c0_i32_0 = arith.constant 0 : i32
    return %arg0, %c0_i32 : i32, i32
  }
}

</mosaic_0001>

<llo_original>
// kernel: autoencoder_forward.1
$region0: #{autoencoder_forward.1}
  #allocation0 [shape = 'u32[]', space=smem, size = 0x4, offset = 0x4, fixed_abs, tag = 'smem constant byte address 0x4 - core index']
  #allocation1 [shape = 'u32[144,128]{1,0:T(1,128)}', space=vmem, size = 0x12000, scoped, tag = 'internal scratch']
  %s0 = inlined_call_operand.vmem [shape: bf16[16,784], index: 0, kind: input, shape index: {}]
  %s1 = inlined_call_operand.vmem [shape: bf16[784,256], index: 1, kind: input, shape index: {}]
  %s2 = inlined_call_operand.vmem [shape: f32[1,256], index: 2, kind: input, shape index: {}]
  %s3 = inlined_call_operand.vmem [shape: bf16[256,784], index: 3, kind: input, shape index: {}]
  %s4 = inlined_call_operand.vmem [shape: f32[1,784], index: 4, kind: input, shape index: {}]
  %s5 = inlined_call_operand.hbm [shape: bf16[16,784], index: 5, kind: output, shape index: {}]
  %s6 = sld [smem:[#allocation0]]
  $region30: #{autoencoder_forward.1} parent=0
    _
  %s8 = ssub.s32 1, %s6
  %s9 = scalar_select 0, %s8, %s6
  $region1: #{autoencoder_forward.1} parent=0
    #allocation2 [shape = 'u8[28672]{0}', space=vmem, size = 0x7000, scoped, tag = 'output window, operand 0, single buffered']
    #allocation3 [shape = 's32[1]{0}', space=sflag, size = 0x4, scoped, tag = 'scoped memory for autoencoder_forward.1']
    %10 = vsyncpa [#allocation3], 0
    // Predicated region
    $region2: #{autoencoder_forward.1} parent=1 // pred_check
      _
    $region3: #{autoencoder_forward.1} parent=1 // pred_check_branch
      %12 = sbr.rel (0) target = $region5
    $region4: #{autoencoder_forward.1} parent=1 // pred_region
      _
    $region5: #{autoencoder_forward.1} parent=1 // pred_fallthru
      _
    // Predicated region
    $region6: #{autoencoder_forward.1} parent=1 // pred_check
      _
    $region7: #{autoencoder_forward.1} parent=1 // pred_check_branch
      %14 = sbr.rel (0) target = $region9
    $region8: #{autoencoder_forward.1} parent=1 // pred_region
      _
    $region9: #{autoencoder_forward.1} parent=1 // pred_fallthru
      _
    // Predicated region
    $region10: #{autoencoder_forward.1} parent=1 // pred_check
      _
    $region11: #{autoencoder_forward.1} parent=1 // pred_check_branch
      %16 = sbr.rel (0) target = $region13
    $region12: #{autoencoder_forward.1} parent=1 // pred_region
      _
    $region13: #{autoencoder_forward.1} parent=1 // pred_fallthru
      _
    // Predicated region
    $region14: #{autoencoder_forward.1} parent=1 // pred_check
      _
    $region15: #{autoencoder_forward.1} parent=1 // pred_check_branch
      %18 = sbr.rel (0) target = $region17
    $region16: #{autoencoder_forward.1} parent=1 // pred_region
      _
    $region17: #{autoencoder_forward.1} parent=1 // pred_fallthru
      _
    // Predicated region
    $region18: #{autoencoder_forward.1} parent=1 // pred_check
      _
    $region19: #{autoencoder_forward.1} parent=1 // pred_check_branch
      %20 = sbr.rel (0) target = $region21
    $region20: #{autoencoder_forward.1} parent=1 // pred_region
      _
    $region21: #{autoencoder_forward.1} parent=1 // pred_fallthru
      _
    %v22 = vld [vmem:[%s0] sm:$0xff]
    %v23 = vld [vmem:[%s0 + $0x8] sm:$0xff]
    %v24 = vld [vmem:[%s0 + $0x10] sm:$0xff]
    %v25 = vld [vmem:[%s0 + $0x18] sm:$0xf]
    %v26 = vld [vmem:[%s0 + $0x1c] sm:$0xff]
    %v27 = vld [vmem:[%s0 + $0x24] sm:$0xff]
    %v28 = vld [vmem:[%s0 + $0x2c] sm:$0xff]
    %v29 = vld [vmem:[%s0 + $0x34] sm:$0xf]
    %v30 = vld [vmem:[%s1] sm:$0xff]
    %v31 = vld [vmem:[%s1 + $0x8] sm:$0xff]
    %v32 = vld [vmem:[%s1 + $0x10] sm:$0xff]
    %v33 = vld [vmem:[%s1 + $0x18] sm:$0xff]
    %v34 = vld [vmem:[%s1 + $0x20] sm:$0xff]
    %v35 = vld [vmem:[%s1 + $0x28] sm:$0xff]
    %v36 = vld [vmem:[%s1 + $0x30] sm:$0xff]
    %v37 = vld [vmem:[%s1 + $0x38] sm:$0xff]
    %v38 = vld [vmem:[%s1 + $0x40] sm:$0xff]
    %v39 = vld [vmem:[%s1 + $0x48] sm:$0xff]
    %v40 = vld [vmem:[%s1 + $0x50] sm:$0xff]
    %v41 = vld [vmem:[%s1 + $0x58] sm:$0xff]
    %v42 = vld [vmem:[%s1 + $0x60] sm:$0xff]
    %v43 = vld [vmem:[%s1 + $0x68] sm:$0xff]
    %v44 = vld [vmem:[%s1 + $0x70] sm:$0xff]
    %v45 = vld [vmem:[%s1 + $0x78] sm:$0xff]
    %v46 = vld [vmem:[%s1 + $0x80] sm:$0xff]
    %v47 = vld [vmem:[%s1 + $0x88] sm:$0xff]
    %v48 = vld [vmem:[%s1 + $0x90] sm:$0xff]
    %v49 = vld [vmem:[%s1 + $0x98] sm:$0xff]
    %v50 = vld [vmem:[%s1 + $0xa0] sm:$0xff]
    %v51 = vld [vmem:[%s1 + $0xa8] sm:$0xff]
    %v52 = vld [vmem:[%s1 + $0xb0] sm:$0xff]
    %v53 = vld [vmem:[%s1 + $0xb8] sm:$0xff]
    %v54 = vld [vmem:[%s1 + $0xc0] sm:$0xff]
    %v55 = vld [vmem:[%s1 + $0xc8] sm:$0xff]
    %v56 = vld [vmem:[%s1 + $0xd0] sm:$0xff]
    %v57 = vld [vmem:[%s1 + $0xd8] sm:$0xff]
    %v58 = vld [vmem:[%s1 + $0xe0] sm:$0xff]
    %v59 = vld [vmem:[%s1 + $0xe8] sm:$0xff]
    %v60 = vld [vmem:[%s1 + $0xf0] sm:$0xff]
    %v61 = vld [vmem:[%s1 + $0xf8] sm:$0xff]
    %v62 = vld [vmem:[%s1 + $0x100] sm:$0xff]
    %v63 = vld [vmem:[%s1 + $0x108] sm:$0xff]
    %v64 = vld [vmem:[%s1 + $0x110] sm:$0xff]
    %v65 = vld [vmem:[%s1 + $0x118] sm:$0xff]
    %v66 = vld [vmem:[%s1 + $0x120] sm:$0xff]
    %v67 = vld [vmem:[%s1 + $0x128] sm:$0xff]
    %v68 = vld [vmem:[%s1 + $0x130] sm:$0xff]
    %v69 = vld [vmem:[%s1 + $0x138] sm:$0xff]
    %v70 = vld [vmem:[%s1 + $0x140] sm:$0xff]
    %v71 = vld [vmem:[%s1 + $0x148] sm:$0xff]
    %v72 = vld [vmem:[%s1 + $0x150] sm:$0xff]
    %v73 = vld [vmem:[%s1 + $0x158] sm:$0xff]
    %v74 = vld [vmem:[%s1 + $0x160] sm:$0xff]
    %v75 = vld [vmem:[%s1 + $0x168] sm:$0xff]
    %v76 = vld [vmem:[%s1 + $0x170] sm:$0xff]
    %v77 = vld [vmem:[%s1 + $0x178] sm:$0xff]
    %v78 = vld [vmem:[%s1 + $0x180] sm:$0xff]
    %v79 = vld [vmem:[%s1 + $0x188] sm:$0xff]
    %v80 = vld [vmem:[%s1 + $0x190] sm:$0xff]
    %v81 = vld [vmem:[%s1 + $0x198] sm:$0xff]
    %v82 = vld [vmem:[%s1 + $0x1a0] sm:$0xff]
    %v83 = vld [vmem:[%s1 + $0x1a8] sm:$0xff]
    %v84 = vld [vmem:[%s1 + $0x1b0] sm:$0xff]
    %v85 = vld [vmem:[%s1 + $0x1b8] sm:$0xff]
    %v86 = vld [vmem:[%s1 + $0x1c0] sm:$0xff]
    %v87 = vld [vmem:[%s1 + $0x1c8] sm:$0xff]
    %v88 = vld [vmem:[%s1 + $0x1d0] sm:$0xff]
    %v89 = vld [vmem:[%s1 + $0x1d8] sm:$0xff]
    %v90 = vld [vmem:[%s1 + $0x1e0] sm:$0xff]
    %v91 = vld [vmem:[%s1 + $0x1e8] sm:$0xff]
    %v92 = vld [vmem:[%s1 + $0x1f0] sm:$0xff]
    %v93 = vld [vmem:[%s1 + $0x1f8] sm:$0xff]
    %v94 = vld [vmem:[%s1 + $0x200] sm:$0xff]
    %v95 = vld [vmem:[%s1 + $0x208] sm:$0xff]
    %v96 = vld [vmem:[%s1 + $0x210] sm:$0xff]
    %v97 = vld [vmem:[%s1 + $0x218] sm:$0xff]
    %v98 = vld [vmem:[%s1 + $0x220] sm:$0xff]
    %v99 = vld [vmem:[%s1 + $0x228] sm:$0xff]
    %v100 = vld [vmem:[%s1 + $0x230] sm:$0xff]
    %v101 = vld [vmem:[%s1 + $0x238] sm:$0xff]
    %v102 = vld [vmem:[%s1 + $0x240] sm:$0xff]
    %v103 = vld [vmem:[%s1 + $0x248] sm:$0xff]
    %v104 = vld [vmem:[%s1 + $0x250] sm:$0xff]
    %v105 = vld [vmem:[%s1 + $0x258] sm:$0xff]
    %v106 = vld [vmem:[%s1 + $0x260] sm:$0xff]
    %v107 = vld [vmem:[%s1 + $0x268] sm:$0xff]
    %v108 = vld [vmem:[%s1 + $0x270] sm:$0xff]
    %v109 = vld [vmem:[%s1 + $0x278] sm:$0xff]
    %v110 = vld [vmem:[%s1 + $0x280] sm:$0xff]
    %v111 = vld [vmem:[%s1 + $0x288] sm:$0xff]
    %v112 = vld [vmem:[%s1 + $0x290] sm:$0xff]
    %v113 = vld [vmem:[%s1 + $0x298] sm:$0xff]
    %v114 = vld [vmem:[%s1 + $0x2a0] sm:$0xff]
    %v115 = vld [vmem:[%s1 + $0x2a8] sm:$0xff]
    %v116 = vld [vmem:[%s1 + $0x2b0] sm:$0xff]
    %v117 = vld [vmem:[%s1 + $0x2b8] sm:$0xff]
    %v118 = vld [vmem:[%s1 + $0x2c0] sm:$0xff]
    %v119 = vld [vmem:[%s1 + $0x2c8] sm:$0xff]
    %v120 = vld [vmem:[%s1 + $0x2d0] sm:$0xff]
    %v121 = vld [vmem:[%s1 + $0x2d8] sm:$0xff]
    %v122 = vld [vmem:[%s1 + $0x2e0] sm:$0xff]
    %v123 = vld [vmem:[%s1 + $0x2e8] sm:$0xff]
    %v124 = vld [vmem:[%s1 + $0x2f0] sm:$0xff]
    %v125 = vld [vmem:[%s1 + $0x2f8] sm:$0xff]
    %v126 = vld [vmem:[%s1 + $0x300] sm:$0xff]
    %v127 = vld [vmem:[%s1 + $0x308] sm:$0xff]
    %v128 = vld [vmem:[%s2] sm:$0x3]
    %v130 = vlaneseq
    %v131 = vshrl.u32 %v130, 7
    %v132 = vsub.s32 0, %v131
    %v133 = vrot.slane %v128, %v132
    %v134 = vlaneseq
    %v135 = vshrl.u32 %v134, 7
    %v136 = vsub.s32 1, %v135
    %v137 = vrot.slane %v128, %v136
    %v148 = vunpack.c.l.b16 %v22
    %v149 = vunpack.c.h.b16 %v22
    %v150 = vunpack.c.l.b16 %v23
    %v151 = vunpack.c.h.b16 %v23
    %v152 = vunpack.c.l.b16 %v24
    %v153 = vunpack.c.h.b16 %v24
    %v154 = vunpack.c.l.b16 %v25
    %v155 = vunpack.c.l.b16 %v26
    %v156 = vunpack.c.h.b16 %v26
    %v157 = vunpack.c.l.b16 %v27
    %v158 = vunpack.c.h.b16 %v27
    %v159 = vunpack.c.l.b16 %v28
    %v160 = vunpack.c.h.b16 %v28
    %v161 = vunpack.c.l.b16 %v29
    %v162 = vpack.c.b16 %v155, %v148
    %v163 = vpack.c.b16 %v156, %v149
    %v164 = vpack.c.b16 %v157, %v150
    %v165 = vpack.c.b16 %v158, %v151
    %v166 = vpack.c.b16 %v159, %v152
    %v167 = vpack.c.b16 %v160, %v153
    %v168 = vpack.c.b16 %v161, %v154
    %v273 = vunpack.c.l.b16 %v30
    %v274 = vunpack.c.h.b16 %v30
    %v275 = vunpack.c.l.b16 %v31
    %v276 = vunpack.c.h.b16 %v31
    %v277 = vunpack.c.l.b16 %v32
    %v278 = vunpack.c.h.b16 %v32
    %v279 = vunpack.c.l.b16 %v33
    %v280 = vunpack.c.h.b16 %v33
    %v281 = vunpack.c.l.b16 %v34
    %v282 = vunpack.c.h.b16 %v34
    %v283 = vunpack.c.l.b16 %v35
    %v284 = vunpack.c.h.b16 %v35
    %v285 = vunpack.c.l.b16 %v36
    %v286 = vunpack.c.h.b16 %v36
    %v287 = vunpack.c.l.b16 %v37
    %v288 = vunpack.c.h.b16 %v37
    %v289 = vunpack.c.l.b16 %v38
    %v290 = vunpack.c.h.b16 %v38
    %v291 = vunpack.c.l.b16 %v39
    %v292 = vunpack.c.h.b16 %v39
    %v293 = vunpack.c.l.b16 %v40
    %v294 = vunpack.c.h.b16 %v40
    %v295 = vunpack.c.l.b16 %v41
    %v296 = vunpack.c.h.b16 %v41
    %v297 = vunpack.c.l.b16 %v42
    %v298 = vunpack.c.h.b16 %v42
    %v299 = vunpack.c.l.b16 %v43
    %v300 = vunpack.c.h.b16 %v43
    %v301 = vunpack.c.l.b16 %v44
    %v302 = vunpack.c.h.b16 %v44
    %v303 = vunpack.c.l.b16 %v45
    %v304 = vunpack.c.h.b16 %v45
    %v305 = vunpack.c.l.b16 %v46
    %v306 = vunpack.c.h.b16 %v46
    %v307 = vunpack.c.l.b16 %v47
    %v308 = vunpack.c.h.b16 %v47
    %v309 = vunpack.c.l.b16 %v48
    %v310 = vunpack.c.h.b16 %v48
    %v311 = vunpack.c.l.b16 %v49
    %v312 = vunpack.c.h.b16 %v49
    %v313 = vunpack.c.l.b16 %v50
    %v314 = vunpack.c.h.b16 %v50
    %v315 = vunpack.c.l.b16 %v51
    %v316 = vunpack.c.h.b16 %v51
    %v317 = vunpack.c.l.b16 %v52
    %v318 = vunpack.c.h.b16 %v52
    %v319 = vunpack.c.l.b16 %v53
    %v320 = vunpack.c.h.b16 %v53
    %v321 = vunpack.c.l.b16 %v54
    %v322 = vunpack.c.h.b16 %v54
    %v323 = vunpack.c.l.b16 %v55
    %v324 = vunpack.c.h.b16 %v55
    %v325 = vunpack.c.l.b16 %v56
    %v326 = vunpack.c.h.b16 %v56
    %v327 = vunpack.c.l.b16 %v57
    %v328 = vunpack.c.h.b16 %v57
    %v329 = vunpack.c.l.b16 %v58
    %v330 = vunpack.c.h.b16 %v58
    %v331 = vunpack.c.l.b16 %v59
    %v332 = vunpack.c.h.b16 %v59
    %v333 = vunpack.c.l.b16 %v60
    %v334 = vunpack.c.h.b16 %v60
    %v335 = vunpack.c.l.b16 %v61
    %v336 = vunpack.c.h.b16 %v61
    %v337 = vunpack.c.l.b16 %v62
    %v338 = vunpack.c.h.b16 %v62
    %v339 = vunpack.c.l.b16 %v63
    %v340 = vunpack.c.h.b16 %v63
    %v341 = vunpack.c.l.b16 %v64
    %v342 = vunpack.c.h.b16 %v64
    %v343 = vunpack.c.l.b16 %v65
    %v344 = vunpack.c.h.b16 %v65
    %v345 = vunpack.c.l.b16 %v66
    %v346 = vunpack.c.h.b16 %v66
    %v347 = vunpack.c.l.b16 %v67
    %v348 = vunpack.c.h.b16 %v67
    %v349 = vunpack.c.l.b16 %v68
    %v350 = vunpack.c.h.b16 %v68
    %v351 = vunpack.c.l.b16 %v69
    %v352 = vunpack.c.h.b16 %v69
    %v353 = vunpack.c.l.b16 %v70
    %v354 = vunpack.c.h.b16 %v70
    %v355 = vunpack.c.l.b16 %v71
    %v356 = vunpack.c.h.b16 %v71
    %v357 = vunpack.c.l.b16 %v72
    %v358 = vunpack.c.h.b16 %v72
    %v359 = vunpack.c.l.b16 %v73
    %v360 = vunpack.c.h.b16 %v73
    %v361 = vunpack.c.l.b16 %v74
    %v362 = vunpack.c.h.b16 %v74
    %v363 = vunpack.c.l.b16 %v75
    %v364 = vunpack.c.h.b16 %v75
    %v365 = vunpack.c.l.b16 %v76
    %v366 = vunpack.c.h.b16 %v76
    %v367 = vunpack.c.l.b16 %v77
    %v368 = vunpack.c.h.b16 %v77
    %v369 = vunpack.c.l.b16 %v78
    %v370 = vunpack.c.h.b16 %v78
    %v371 = vunpack.c.l.b16 %v79
    %v372 = vunpack.c.h.b16 %v79
    %v373 = vunpack.c.l.b16 %v80
    %v374 = vunpack.c.h.b16 %v80
    %v375 = vunpack.c.l.b16 %v81
    %v376 = vunpack.c.h.b16 %v81
    %v377 = vunpack.c.l.b16 %v82
    %v378 = vunpack.c.h.b16 %v82
    %v379 = vunpack.c.l.b16 %v83
    %v380 = vunpack.c.h.b16 %v83
    %v381 = vunpack.c.l.b16 %v84
    %v382 = vunpack.c.h.b16 %v84
    %v383 = vunpack.c.l.b16 %v85
    %v384 = vunpack.c.h.b16 %v85
    %v385 = vunpack.c.l.b16 %v86
    %v386 = vunpack.c.h.b16 %v86
    %v387 = vunpack.c.l.b16 %v87
    %v388 = vunpack.c.h.b16 %v87
    %v389 = vunpack.c.l.b16 %v88
    %v390 = vunpack.c.h.b16 %v88
    %v391 = vunpack.c.l.b16 %v89
    %v392 = vunpack.c.h.b16 %v89
    %v393 = vunpack.c.l.b16 %v90
    %v394 = vunpack.c.h.b16 %v90
    %v395 = vunpack.c.l.b16 %v91
    %v396 = vunpack.c.h.b16 %v91
    %v397 = vunpack.c.l.b16 %v92
    %v398 = vunpack.c.h.b16 %v92
    %v399 = vunpack.c.l.b16 %v93
    %v400 = vunpack.c.h.b16 %v93
    %v401 = vunpack.c.l.b16 %v94
    %v402 = vunpack.c.h.b16 %v94
    %v403 = vunpack.c.l.b16 %v95
    %v404 = vunpack.c.h.b16 %v95
    %v405 = vunpack.c.l.b16 %v96
    %v406 = vunpack.c.h.b16 %v96
    %v407 = vunpack.c.l.b16 %v97
    %v408 = vunpack.c.h.b16 %v97
    %v409 = vunpack.c.l.b16 %v98
    %v410 = vunpack.c.h.b16 %v98
    %v411 = vunpack.c.l.b16 %v99
    %v412 = vunpack.c.h.b16 %v99
    %v413 = vunpack.c.l.b16 %v100
    %v414 = vunpack.c.h.b16 %v100
    %v415 = vunpack.c.l.b16 %v101
    %v416 = vunpack.c.h.b16 %v101
    %v417 = vunpack.c.l.b16 %v102
    %v418 = vunpack.c.h.b16 %v102
    %v419 = vunpack.c.l.b16 %v103
    %v420 = vunpack.c.h.b16 %v103
    %v421 = vunpack.c.l.b16 %v104
    %v422 = vunpack.c.h.b16 %v104
    %v423 = vunpack.c.l.b16 %v105
    %v424 = vunpack.c.h.b16 %v105
    %v425 = vunpack.c.l.b16 %v106
    %v426 = vunpack.c.h.b16 %v106
    %v427 = vunpack.c.l.b16 %v107
    %v428 = vunpack.c.h.b16 %v107
    %v429 = vunpack.c.l.b16 %v108
    %v430 = vunpack.c.h.b16 %v108
    %v431 = vunpack.c.l.b16 %v109
    %v432 = vunpack.c.h.b16 %v109
    %v433 = vunpack.c.l.b16 %v110
    %v434 = vunpack.c.h.b16 %v110
    %v435 = vunpack.c.l.b16 %v111
    %v436 = vunpack.c.h.b16 %v111
    %v437 = vunpack.c.l.b16 %v112
    %v438 = vunpack.c.h.b16 %v112
    %v439 = vunpack.c.l.b16 %v113
    %v440 = vunpack.c.h.b16 %v113
    %v441 = vunpack.c.l.b16 %v114
    %v442 = vunpack.c.h.b16 %v114
    %v443 = vunpack.c.l.b16 %v115
    %v444 = vunpack.c.h.b16 %v115
    %v445 = vunpack.c.l.b16 %v116
    %v446 = vunpack.c.h.b16 %v116
    %v447 = vunpack.c.l.b16 %v117
    %v448 = vunpack.c.h.b16 %v117
    %v449 = vunpack.c.l.b16 %v118
    %v450 = vunpack.c.h.b16 %v118
    %v451 = vunpack.c.l.b16 %v119
    %v452 = vunpack.c.h.b16 %v119
    %v453 = vunpack.c.l.b16 %v120
    %v454 = vunpack.c.h.b16 %v120
    %v455 = vunpack.c.l.b16 %v121
    %v456 = vunpack.c.h.b16 %v121
    %v457 = vunpack.c.l.b16 %v122
    %v458 = vunpack.c.h.b16 %v122
    %v459 = vunpack.c.l.b16 %v123
    %v460 = vunpack.c.h.b16 %v123
    %v461 = vunpack.c.l.b16 %v124
    %v462 = vunpack.c.h.b16 %v124
    %v463 = vunpack.c.l.b16 %v125
    %v464 = vunpack.c.h.b16 %v125
    %v465 = vunpack.c.l.b16 %v126
    %v466 = vunpack.c.h.b16 %v126
    %v467 = vunpack.c.l.b16 %v127
    %v468 = vunpack.c.h.b16 %v127
    %v469 = vpack.c.b16 %v275, %v273
    %v470 = vpack.c.b16 %v276, %v274
    %v471 = vpack.c.b16 %v279, %v277
    %v472 = vpack.c.b16 %v280, %v278
    %v473 = vpack.c.b16 %v283, %v281
    %v474 = vpack.c.b16 %v284, %v282
    %v475 = vpack.c.b16 %v287, %v285
    %v476 = vpack.c.b16 %v288, %v286
    %v477 = vpack.c.b16 %v291, %v289
    %v478 = vpack.c.b16 %v292, %v290
    %v479 = vpack.c.b16 %v295, %v293
    %v480 = vpack.c.b16 %v296, %v294
    %v481 = vpack.c.b16 %v299, %v297
    %v482 = vpack.c.b16 %v300, %v298
    %v483 = vpack.c.b16 %v303, %v301
    %v484 = vpack.c.b16 %v304, %v302
    %v485 = vpack.c.b16 %v307, %v305
    %v486 = vpack.c.b16 %v308, %v306
    %v487 = vpack.c.b16 %v311, %v309
    %v488 = vpack.c.b16 %v312, %v310
    %v489 = vpack.c.b16 %v315, %v313
    %v490 = vpack.c.b16 %v316, %v314
    %v491 = vpack.c.b16 %v319, %v317
    %v492 = vpack.c.b16 %v320, %v318
    %v493 = vpack.c.b16 %v323, %v321
    %v494 = vpack.c.b16 %v324, %v322
    %v495 = vpack.c.b16 %v327, %v325
    %v496 = vpack.c.b16 %v328, %v326
    %v497 = vpack.c.b16 %v331, %v329
    %v498 = vpack.c.b16 %v332, %v330
    %v499 = vpack.c.b16 %v335, %v333
    %v500 = vpack.c.b16 %v336, %v334
    %v501 = vpack.c.b16 %v339, %v337
    %v502 = vpack.c.b16 %v340, %v338
    %v503 = vpack.c.b16 %v343, %v341
    %v504 = vpack.c.b16 %v344, %v342
    %v505 = vpack.c.b16 %v347, %v345
    %v506 = vpack.c.b16 %v348, %v346
    %v507 = vpack.c.b16 %v351, %v349
    %v508 = vpack.c.b16 %v352, %v350
    %v509 = vpack.c.b16 %v355, %v353
    %v510 = vpack.c.b16 %v356, %v354
    %v511 = vpack.c.b16 %v359, %v357
    %v512 = vpack.c.b16 %v360, %v358
    %v513 = vpack.c.b16 %v363, %v361
    %v514 = vpack.c.b16 %v364, %v362
    %v515 = vpack.c.b16 %v367, %v365
    %v516 = vpack.c.b16 %v368, %v366
    %v517 = vpack.c.b16 %v371, %v369
    %v518 = vpack.c.b16 %v372, %v370
    %v519 = vpack.c.b16 %v375, %v373
    %v520 = vpack.c.b16 %v376, %v374
    %v521 = vpack.c.b16 %v379, %v377
    %v522 = vpack.c.b16 %v380, %v378
    %v523 = vpack.c.b16 %v383, %v381
    %v524 = vpack.c.b16 %v384, %v382
    %v525 = vpack.c.b16 %v387, %v385
    %v526 = vpack.c.b16 %v388, %v386
    %v527 = vpack.c.b16 %v391, %v389
    %v528 = vpack.c.b16 %v392, %v390
    %v529 = vpack.c.b16 %v395, %v393
    %v530 = vpack.c.b16 %v396, %v394
    %v531 = vpack.c.b16 %v399, %v397
    %v532 = vpack.c.b16 %v400, %v398
    %v533 = vpack.c.b16 %v403, %v401
    %v534 = vpack.c.b16 %v404, %v402
    %v535 = vpack.c.b16 %v407, %v405
    %v536 = vpack.c.b16 %v408, %v406
    %v537 = vpack.c.b16 %v411, %v409
    %v538 = vpack.c.b16 %v412, %v410
    %v539 = vpack.c.b16 %v415, %v413
    %v540 = vpack.c.b16 %v416, %v414
    %v541 = vpack.c.b16 %v419, %v417
    %v542 = vpack.c.b16 %v420, %v418
    %v543 = vpack.c.b16 %v423, %v421
    %v544 = vpack.c.b16 %v424, %v422
    %v545 = vpack.c.b16 %v427, %v425
    %v546 = vpack.c.b16 %v428, %v426
    %v547 = vpack.c.b16 %v431, %v429
    %v548 = vpack.c.b16 %v432, %v430
    %v549 = vpack.c.b16 %v435, %v433
    %v550 = vpack.c.b16 %v436, %v434
    %v551 = vpack.c.b16 %v439, %v437
    %v552 = vpack.c.b16 %v440, %v438
    %v553 = vpack.c.b16 %v443, %v441
    %v554 = vpack.c.b16 %v444, %v442
    %v555 = vpack.c.b16 %v447, %v445
    %v556 = vpack.c.b16 %v448, %v446
    %v557 = vpack.c.b16 %v451, %v449
    %v558 = vpack.c.b16 %v452, %v450
    %v559 = vpack.c.b16 %v455, %v453
    %v560 = vpack.c.b16 %v456, %v454
    %v561 = vpack.c.b16 %v459, %v457
    %v562 = vpack.c.b16 %v460, %v458
    %v563 = vpack.c.b16 %v463, %v461
    %v564 = vpack.c.b16 %v464, %v462
    %v565 = vpack.c.b16 %v467, %v465
    %v566 = vpack.c.b16 %v468, %v466
    %vm665 = vcmask 130048
    %v667 = vsel %vm665, %v168, 0
    %669 = vmatprep.subr.bf16.mxu0 %v470
    %670 = vmatpush1.bf16.msra.mxu0 %v469
    %671 = vmatprep.subr.bf16.mxu0 %v472
    %672 = vmatpush1.bf16.msra.mxu0 %v471
    %673 = vmatprep.subr.bf16.mxu0 %v474
    %674 = vmatpush1.bf16.msra.mxu0 %v473
    %675 = vmatprep.subr.bf16.mxu0 %v476
    %676 = vmatpush1.bf16.msra.mxu0 %v475
    %677 = vmatprep.subr.bf16.mxu0 %v478
    %678 = vmatpush1.bf16.msra.mxu0 %v477
    %679 = vmatprep.subr.bf16.mxu0 %v480
    %680 = vmatpush1.bf16.msra.mxu0 %v479
    %681 = vmatprep.subr.bf16.mxu0 %v482
    %682 = vmatpush1.bf16.msra.mxu0 %v481
    %683 = vmatprep.subr.bf16.mxu0 %v484
    %684 = vmatpush1.bf16.msra.mxu0 %v483
    %685 = vmatprep.subr.bf16.mxu0 %v486
    %686 = vmatpush1.bf16.msra.mxu0 %v485
    %687 = vmatprep.subr.bf16.mxu0 %v488
    %688 = vmatpush1.bf16.msra.mxu0 %v487
    %689 = vmatprep.subr.bf16.mxu0 %v490
    %690 = vmatpush1.bf16.msra.mxu0 %v489
    %691 = vmatprep.subr.bf16.mxu0 %v492
    %692 = vmatpush1.bf16.msra.mxu0 %v491
    %693 = vmatprep.subr.bf16.mxu0 %v494
    %694 = vmatpush1.bf16.msra.mxu0 %v493
    %695 = vmatprep.subr.bf16.mxu0 %v496
    %696 = vmatpush1.bf16.msra.mxu0 %v495
    %697 = vmatprep.subr.bf16.mxu0 %v498
    %698 = vmatpush1.bf16.msra.mxu0 %v497
    %699 = vmatprep.subr.bf16.mxu0 %v500
    %700 = vmatpush1.bf16.msra.mxu0 %v499
    %701 = vmatprep.mubr.bf16.mxu0 %v163
    %702 = vmatmul.mubr.bf16.gmra.mrb[0].mxu0 %v162
    %v703 = vpop.f32.mrb[0].mxu0
    %v704 = vadd.f32 %v133, %v703
    %v705 = vpop.f32.mrb[0].mxu0
    %v706 = vadd.f32 %v137, %v705
    %v707 = vpop.f32.mrb[0].mxu0
    %v708 = vadd.f32 %v133, %v707
    %v709 = vpop.f32.mrb[0].mxu0
    %v710 = vadd.f32 %v137, %v709
    %711 = vdwg.mxu0
    %712 = vmatprep.subr.bf16.mxu0 %v502
    %713 = vmatpush1.bf16.msra.mxu0 %v501
    %714 = vmatprep.subr.bf16.mxu0 %v504
    %715 = vmatpush1.bf16.msra.mxu0 %v503
    %716 = vmatprep.subr.bf16.mxu0 %v506
    %717 = vmatpush1.bf16.msra.mxu0 %v505
    %718 = vmatprep.subr.bf16.mxu0 %v508
    %719 = vmatpush1.bf16.msra.mxu0 %v507
    %720 = vmatprep.subr.bf16.mxu0 %v510
    %721 = vmatpush1.bf16.msra.mxu0 %v509
    %722 = vmatprep.subr.bf16.mxu0 %v512
    %723 = vmatpush1.bf16.msra.mxu0 %v511
    %724 = vmatprep.subr.bf16.mxu0 %v514
    %725 = vmatpush1.bf16.msra.mxu0 %v513
    %726 = vmatprep.subr.bf16.mxu0 %v516
    %727 = vmatpush1.bf16.msra.mxu0 %v515
    %728 = vmatprep.subr.bf16.mxu0 %v518
    %729 = vmatpush1.bf16.msra.mxu0 %v517
    %730 = vmatprep.subr.bf16.mxu0 %v520
    %731 = vmatpush1.bf16.msra.mxu0 %v519
    %732 = vmatprep.subr.bf16.mxu0 %v522
    %733 = vmatpush1.bf16.msra.mxu0 %v521
    %734 = vmatprep.subr.bf16.mxu0 %v524
    %735 = vmatpush1.bf16.msra.mxu0 %v523
    %736 = vmatprep.subr.bf16.mxu0 %v526
    %737 = vmatpush1.bf16.msra.mxu0 %v525
    %738 = vmatprep.subr.bf16.mxu0 %v528
    %739 = vmatpush1.bf16.msra.mxu0 %v527
    %740 = vmatprep.subr.bf16.mxu0 %v530
    %741 = vmatpush1.bf16.msra.mxu0 %v529
    %742 = vmatprep.subr.bf16.mxu0 %v532
    %743 = vmatpush1.bf16.msra.mxu0 %v531
    %744 = vmatprep.mubr.bf16.mxu0 %v165
    %745 = vmatmul.mubr.bf16.gmra.mrb[0].mxu0 %v164
    %v746 = vpop.f32.mrb[0].mxu0
    %v747 = vadd.f32 %v704, %v746
    %v748 = vpop.f32.mrb[0].mxu0
    %v749 = vadd.f32 %v706, %v748
    %v750 = vpop.f32.mrb[0].mxu0
    %v751 = vadd.f32 %v708, %v750
    %v752 = vpop.f32.mrb[0].mxu0
    %v753 = vadd.f32 %v710, %v752
    %754 = vdwg.mxu0
    %755 = vmatprep.subr.bf16.mxu0 %v534
    %756 = vmatpush1.bf16.msra.mxu0 %v533
    %757 = vmatprep.subr.bf16.mxu0 %v536
    %758 = vmatpush1.bf16.msra.mxu0 %v535
    %759 = vmatprep.subr.bf16.mxu0 %v538
    %760 = vmatpush1.bf16.msra.mxu0 %v537
    %761 = vmatprep.subr.bf16.mxu0 %v540
    %762 = vmatpush1.bf16.msra.mxu0 %v539
    %763 = vmatprep.subr.bf16.mxu0 %v542
    %764 = vmatpush1.bf16.msra.mxu0 %v541
    %765 = vmatprep.subr.bf16.mxu0 %v544
    %766 = vmatpush1.bf16.msra.mxu0 %v543
    %767 = vmatprep.subr.bf16.mxu0 %v546
    %768 = vmatpush1.bf16.msra.mxu0 %v545
    %769 = vmatprep.subr.bf16.mxu0 %v548
    %770 = vmatpush1.bf16.msra.mxu0 %v547
    %771 = vmatprep.subr.bf16.mxu0 %v550
    %772 = vmatpush1.bf16.msra.mxu0 %v549
    %773 = vmatprep.subr.bf16.mxu0 %v552
    %774 = vmatpush1.bf16.msra.mxu0 %v551
    %775 = vmatprep.subr.bf16.mxu0 %v554
    %776 = vmatpush1.bf16.msra.mxu0 %v553
    %777 = vmatprep.subr.bf16.mxu0 %v556
    %778 = vmatpush1.bf16.msra.mxu0 %v555
    %779 = vmatprep.subr.bf16.mxu0 %v558
    %780 = vmatpush1.bf16.msra.mxu0 %v557
    %781 = vmatprep.subr.bf16.mxu0 %v560
    %782 = vmatpush1.bf16.msra.mxu0 %v559
    %783 = vmatprep.subr.bf16.mxu0 %v562
    %784 = vmatpush1.bf16.msra.mxu0 %v561
    %785 = vmatprep.subr.bf16.mxu0 %v564
    %786 = vmatpush1.bf16.msra.mxu0 %v563
    %787 = vmatprep.mubr.bf16.mxu0 %v167
    %788 = vmatmul.mubr.bf16.gmra.mrb[0].mxu0 %v166
    %v789 = vpop.f32.mrb[0].mxu0
    %v790 = vadd.f32 %v747, %v789
    %v791 = vpop.f32.mrb[0].mxu0
    %v792 = vadd.f32 %v749, %v791
    %v793 = vpop.f32.mrb[0].mxu0
    %v794 = vadd.f32 %v751, %v793
    %v795 = vpop.f32.mrb[0].mxu0
    %v796 = vadd.f32 %v753, %v795
    %797 = vdwg.mxu0
    %798 = vmatprep.subr.bf16.mxu0 %v566
    %799 = vmatpush1.bf16.msra.mxu0 %v565
    %800 = vmatprep.subr.bf16.mxu0 0
    %801 = vmatpush1.bf16.msra.mxu0 0
    %802 = vmatprep.subr.bf16.mxu0 0
    %803 = vmatpush1.bf16.msra.mxu0 0
    %804 = vmatprep.subr.bf16.mxu0 0
    %805 = vmatpush1.bf16.msra.mxu0 0
    %806 = vmatprep.subr.bf16.mxu0 0
    %807 = vmatpush1.bf16.msra.mxu0 0
    %808 = vmatprep.subr.bf16.mxu0 0
    %809 = vmatpush1.bf16.msra.mxu0 0
    %810 = vmatprep.subr.bf16.mxu0 0
    %811 = vmatpush1.bf16.msra.mxu0 0
    %812 = vmatprep.subr.bf16.mxu0 0
    %813 = vmatpush1.bf16.msra.mxu0 0
    %814 = vmatprep.subr.bf16.mxu0 0
    %815 = vmatpush1.bf16.msra.mxu0 0
    %816 = vmatprep.subr.bf16.mxu0 0
    %817 = vmatpush1.bf16.msra.mxu0 0
    %818 = vmatprep.subr.bf16.mxu0 0
    %819 = vmatpush1.bf16.msra.mxu0 0
    %820 = vmatprep.subr.bf16.mxu0 0
    %821 = vmatpush1.bf16.msra.mxu0 0
    %822 = vmatprep.subr.bf16.mxu0 0
    %823 = vmatpush1.bf16.msra.mxu0 0
    %824 = vmatprep.subr.bf16.mxu0 0
    %825 = vmatpush1.bf16.msra.mxu0 0
    %826 = vmatprep.subr.bf16.mxu0 0
    %827 = vmatpush1.bf16.msra.mxu0 0
    %828 = vmatprep.subr.bf16.mxu0 0
    %829 = vmatpush1.bf16.msra.mxu0 0
    %830 = vmatprep.mubr.bf16.mxu0 0
    %831 = vmatmul.mubr.bf16.gmra.mrb[0].mxu0 %v667
    %v832 = vpop.f32.mrb[0].mxu0
    %v833 = vadd.f32 %v790, %v832
    %v834 = vpop.f32.mrb[0].mxu0
    %v835 = vadd.f32 %v792, %v834
    %v836 = vpop.f32.mrb[0].mxu0
    %v837 = vadd.f32 %v794, %v836
    %v838 = vpop.f32.mrb[0].mxu0
    %v839 = vadd.f32 %v796, %v838
    %840 = vdwg.mxu0
    %v841 = vmax.f32 %v833, 0.0
    %v842 = vmax.f32 %v835, 0.0
    %v843 = vmax.f32 %v837, 0.0
    %v844 = vmax.f32 %v839, 0.0
    %v845 = vpack.c.bf16 %v843, %v841
    %v846 = vpack.c.bf16 %v844, %v842
    %v847 = vld [vmem:[%s3] sm:$0xff]
    %v848 = vld [vmem:[%s3 + $0x8] sm:$0xff]
    %v849 = vld [vmem:[%s3 + $0x10] sm:$0xff]
    %v850 = vld [vmem:[%s3 + $0x18] sm:$0xf]
    %v851 = vld [vmem:[%s3 + $0x1c] sm:$0xff]
    %v852 = vld [vmem:[%s3 + $0x24] sm:$0xff]
    %v853 = vld [vmem:[%s3 + $0x2c] sm:$0xff]
    %v854 = vld [vmem:[%s3 + $0x34] sm:$0xf]
    %v855 = vld [vmem:[%s3 + $0x38] sm:$0xff]
    %v856 = vld [vmem:[%s3 + $0x40] sm:$0xff]
    %v857 = vld [vmem:[%s3 + $0x48] sm:$0xff]
    %v858 = vld [vmem:[%s3 + $0x50] sm:$0xf]
    %v859 = vld [vmem:[%s3 + $0x54] sm:$0xff]
    %v860 = vld [vmem:[%s3 + $0x5c] sm:$0xff]
    %v861 = vld [vmem:[%s3 + $0x64] sm:$0xff]
    %v862 = vld [vmem:[%s3 + $0x6c] sm:$0xf]
    %v863 = vld [vmem:[%s3 + $0x70] sm:$0xff]
    %v864 = vld [vmem:[%s3 + $0x78] sm:$0xff]
    %v865 = vld [vmem:[%s3 + $0x80] sm:$0xff]
    %v866 = vld [vmem:[%s3 + $0x88] sm:$0xf]
    %v867 = vld [vmem:[%s3 + $0x8c] sm:$0xff]
    %v868 = vld [vmem:[%s3 + $0x94] sm:$0xff]
    %v869 = vld [vmem:[%s3 + $0x9c] sm:$0xff]
    %v870 = vld [vmem:[%s3 + $0xa4] sm:$0xf]
    %v871 = vld [vmem:[%s3 + $0xa8] sm:$0xff]
    %v872 = vld [vmem:[%s3 + $0xb0] sm:$0xff]
    %v873 = vld [vmem:[%s3 + $0xb8] sm:$0xff]
    %v874 = vld [vmem:[%s3 + $0xc0] sm:$0xf]
    %v875 = vld [vmem:[%s3 + $0xc4] sm:$0xff]
    %v876 = vld [vmem:[%s3 + $0xcc] sm:$0xff]
    %v877 = vld [vmem:[%s3 + $0xd4] sm:$0xff]
    %v878 = vld [vmem:[%s3 + $0xdc] sm:$0xf]
    %v879 = vld [vmem:[%s3 + $0xe0] sm:$0xff]
    %v880 = vld [vmem:[%s3 + $0xe8] sm:$0xff]
    %v881 = vld [vmem:[%s3 + $0xf0] sm:$0xff]
    %v882 = vld [vmem:[%s3 + $0xf8] sm:$0xf]
    %v883 = vld [vmem:[%s3 + $0xfc] sm:$0xff]
    %v884 = vld [vmem:[%s3 + $0x104] sm:$0xff]
    %v885 = vld [vmem:[%s3 + $0x10c] sm:$0xff]
    %v886 = vld [vmem:[%s3 + $0x114] sm:$0xf]
    %v887 = vld [vmem:[%s3 + $0x118] sm:$0xff]
    %v888 = vld [vmem:[%s3 + $0x120] sm:$0xff]
    %v889 = vld [vmem:[%s3 + $0x128] sm:$0xff]
    %v890 = vld [vmem:[%s3 + $0x130] sm:$0xf]
    %v891 = vld [vmem:[%s3 + $0x134] sm:$0xff]
    %v892 = vld [vmem:[%s3 + $0x13c] sm:$0xff]
    %v893 = vld [vmem:[%s3 + $0x144] sm:$0xff]
    %v894 = vld [vmem:[%s3 + $0x14c] sm:$0xf]
    %v895 = vld [vmem:[%s3 + $0x150] sm:$0xff]
    %v896 = vld [vmem:[%s3 + $0x158] sm:$0xff]
    %v897 = vld [vmem:[%s3 + $0x160] sm:$0xff]
    %v898 = vld [vmem:[%s3 + $0x168] sm:$0xf]
    %v899 = vld [vmem:[%s3 + $0x16c] sm:$0xff]
    %v900 = vld [vmem:[%s3 + $0x174] sm:$0xff]
    %v901 = vld [vmem:[%s3 + $0x17c] sm:$0xff]
    %v902 = vld [vmem:[%s3 + $0x184] sm:$0xf]
    %v903 = vld [vmem:[%s3 + $0x188] sm:$0xff]
    %v904 = vld [vmem:[%s3 + $0x190] sm:$0xff]
    %v905 = vld [vmem:[%s3 + $0x198] sm:$0xff]
    %v906 = vld [vmem:[%s3 + $0x1a0] sm:$0xf]
    %v907 = vld [vmem:[%s3 + $0x1a4] sm:$0xff]
    %v908 = vld [vmem:[%s3 + $0x1ac] sm:$0xff]
    %v909 = vld [vmem:[%s3 + $0x1b4] sm:$0xff]
    %v910 = vld [vmem:[%s3 + $0x1bc] sm:$0xf]
    %v911 = vld [vmem:[%s3 + $0x1c0] sm:$0xff]
    %v912 = vld [vmem:[%s3 + $0x1c8] sm:$0xff]
    %v913 = vld [vmem:[%s3 + $0x1d0] sm:$0xff]
    %v914 = vld [vmem:[%s3 + $0x1d8] sm:$0xf]
    %v915 = vld [vmem:[%s3 + $0x1dc] sm:$0xff]
    %v916 = vld [vmem:[%s3 + $0x1e4] sm:$0xff]
    %v917 = vld [vmem:[%s3 + $0x1ec] sm:$0xff]
    %v918 = vld [vmem:[%s3 + $0x1f4] sm:$0xf]
    %v919 = vld [vmem:[%s3 + $0x1f8] sm:$0xff]
    %v920 = vld [vmem:[%s3 + $0x200] sm:$0xff]
    %v921 = vld [vmem:[%s3 + $0x208] sm:$0xff]
    %v922 = vld [vmem:[%s3 + $0x210] sm:$0xf]
    %v923 = vld [vmem:[%s3 + $0x214] sm:$0xff]
    %v924 = vld [vmem:[%s3 + $0x21c] sm:$0xff]
    %v925 = vld [vmem:[%s3 + $0x224] sm:$0xff]
    %v926 = vld [vmem:[%s3 + $0x22c] sm:$0xf]
    %v927 = vld [vmem:[%s3 + $0x230] sm:$0xff]
    %v928 = vld [vmem:[%s3 + $0x238] sm:$0xff]
    %v929 = vld [vmem:[%s3 + $0x240] sm:$0xff]
    %v930 = vld [vmem:[%s3 + $0x248] sm:$0xf]
    %v931 = vld [vmem:[%s3 + $0x24c] sm:$0xff]
    %v932 = vld [vmem:[%s3 + $0x254] sm:$0xff]
    %v933 = vld [vmem:[%s3 + $0x25c] sm:$0xff]
    %v934 = vld [vmem:[%s3 + $0x264] sm:$0xf]
    %v935 = vld [vmem:[%s3 + $0x268] sm:$0xff]
    %v936 = vld [vmem:[%s3 + $0x270] sm:$0xff]
    %v937 = vld [vmem:[%s3 + $0x278] sm:$0xff]
    %v938 = vld [vmem:[%s3 + $0x280] sm:$0xf]
    %v939 = vld [vmem:[%s3 + $0x284] sm:$0xff]
    %v940 = vld [vmem:[%s3 + $0x28c] sm:$0xff]
    %v941 = vld [vmem:[%s3 + $0x294] sm:$0xff]
    %v942 = vld [vmem:[%s3 + $0x29c] sm:$0xf]
    %v943 = vld [vmem:[%s3 + $0x2a0] sm:$0xff]
    %v944 = vld [vmem:[%s3 + $0x2a8] sm:$0xff]
    %v945 = vld [vmem:[%s3 + $0x2b0] sm:$0xff]
    %v946 = vld [vmem:[%s3 + $0x2b8] sm:$0xf]
    %v947 = vld [vmem:[%s3 + $0x2bc] sm:$0xff]
    %v948 = vld [vmem:[%s3 + $0x2c4] sm:$0xff]
    %v949 = vld [vmem:[%s3 + $0x2cc] sm:$0xff]
    %v950 = vld [vmem:[%s3 + $0x2d4] sm:$0xf]
    %v951 = vld [vmem:[%s3 + $0x2d8] sm:$0xff]
    %v952 = vld [vmem:[%s3 + $0x2e0] sm:$0xff]
    %v953 = vld [vmem:[%s3 + $0x2e8] sm:$0xff]
    %v954 = vld [vmem:[%s3 + $0x2f0] sm:$0xf]
    %v955 = vld [vmem:[%s3 + $0x2f4] sm:$0xff]
    %v956 = vld [vmem:[%s3 + $0x2fc] sm:$0xff]
    %v957 = vld [vmem:[%s3 + $0x304] sm:$0xff]
    %v958 = vld [vmem:[%s3 + $0x30c] sm:$0xf]
    %v959 = vld [vmem:[%s3 + $0x310] sm:$0xff]
    %v960 = vld [vmem:[%s3 + $0x318] sm:$0xff]
    %v961 = vld [vmem:[%s3 + $0x320] sm:$0xff]
    %v962 = vld [vmem:[%s3 + $0x328] sm:$0xf]
    %v963 = vld [vmem:[%s3 + $0x32c] sm:$0xff]
    %v964 = vld [vmem:[%s3 + $0x334] sm:$0xff]
    %v965 = vld [vmem:[%s3 + $0x33c] sm:$0xff]
    %v966 = vld [vmem:[%s3 + $0x344] sm:$0xf]
    %v967 = vld [vmem:[%s3 + $0x348] sm:$0xff]
    %v968 = vld [vmem:[%s3 + $0x350] sm:$0xff]
    %v969 = vld [vmem:[%s3 + $0x358] sm:$0xff]
    %v970 = vld [vmem:[%s3 + $0x360] sm:$0xf]
    %v971 = vld [vmem:[%s3 + $0x364] sm:$0xff]
    %v972 = vld [vmem:[%s3 + $0x36c] sm:$0xff]
    %v973 = vld [vmem:[%s3 + $0x374] sm:$0xff]
    %v974 = vld [vmem:[%s3 + $0x37c] sm:$0xf]
    %v975 = vld [vmem:[%s4] sm:$0x7f]
    %v977 = vlaneseq
    %v978 = vshrl.u32 %v977, 7
    %v979 = vsub.s32 0, %v978
    %v980 = vrot.slane %v975, %v979
    %v981 = vlaneseq
    %v982 = vshrl.u32 %v981, 7
    %v983 = vsub.s32 1, %v982
    %v984 = vrot.slane %v975, %v983
    %v985 = vlaneseq
    %v986 = vshrl.u32 %v985, 7
    %v987 = vsub.s32 2, %v986
    %v988 = vrot.slane %v975, %v987
    %v989 = vlaneseq
    %v990 = vshrl.u32 %v989, 7
    %v991 = vsub.s32 3, %v990
    %v992 = vrot.slane %v975, %v991
    %v993 = vlaneseq
    %v994 = vshrl.u32 %v993, 7
    %v995 = vsub.s32 4, %v994
    %v996 = vrot.slane %v975, %v995
    %v997 = vlaneseq
    %v998 = vshrl.u32 %v997, 7
    %v999 = vsub.s32 5, %v998
    %v1000 = vrot.slane %v975, %v999
    %v1001 = vlaneseq
    %v1002 = vshrl.u32 %v1001, 7
    %v1003 = vsub.s32 6, %v1002
    %v1004 = vrot.slane %v975, %v1003
    %v1140 = vunpack.c.l.b16 %v847
    %v1141 = vunpack.c.h.b16 %v847
    %v1142 = vunpack.c.l.b16 %v848
    %v1143 = vunpack.c.h.b16 %v848
    %v1144 = vunpack.c.l.b16 %v849
    %v1145 = vunpack.c.h.b16 %v849
    %v1146 = vunpack.c.l.b16 %v850
    %v1147 = vunpack.c.l.b16 %v851
    %v1148 = vunpack.c.h.b16 %v851
    %v1149 = vunpack.c.l.b16 %v852
    %v1150 = vunpack.c.h.b16 %v852
    %v1151 = vunpack.c.l.b16 %v853
    %v1152 = vunpack.c.h.b16 %v853
    %v1153 = vunpack.c.l.b16 %v854
    %v1154 = vunpack.c.l.b16 %v855
    %v1155 = vunpack.c.h.b16 %v855
    %v1156 = vunpack.c.l.b16 %v856
    %v1157 = vunpack.c.h.b16 %v856
    %v1158 = vunpack.c.l.b16 %v857
    %v1159 = vunpack.c.h.b16 %v857
    %v1160 = vunpack.c.l.b16 %v858
    %v1161 = vunpack.c.l.b16 %v859
    %v1162 = vunpack.c.h.b16 %v859
    %v1163 = vunpack.c.l.b16 %v860
    %v1164 = vunpack.c.h.b16 %v860
    %v1165 = vunpack.c.l.b16 %v861
    %v1166 = vunpack.c.h.b16 %v861
    %v1167 = vunpack.c.l.b16 %v862
    %v1168 = vunpack.c.l.b16 %v863
    %v1169 = vunpack.c.h.b16 %v863
    %v1170 = vunpack.c.l.b16 %v864
    %v1171 = vunpack.c.h.b16 %v864
    %v1172 = vunpack.c.l.b16 %v865
    %v1173 = vunpack.c.h.b16 %v865
    %v1174 = vunpack.c.l.b16 %v866
    %v1175 = vunpack.c.l.b16 %v867
    %v1176 = vunpack.c.h.b16 %v867
    %v1177 = vunpack.c.l.b16 %v868
    %v1178 = vunpack.c.h.b16 %v868
    %v1179 = vunpack.c.l.b16 %v869
    %v1180 = vunpack.c.h.b16 %v869
    %v1181 = vunpack.c.l.b16 %v870
    %v1182 = vunpack.c.l.b16 %v871
    %v1183 = vunpack.c.h.b16 %v871
    %v1184 = vunpack.c.l.b16 %v872
    %v1185 = vunpack.c.h.b16 %v872
    %v1186 = vunpack.c.l.b16 %v873
    %v1187 = vunpack.c.h.b16 %v873
    %v1188 = vunpack.c.l.b16 %v874
    %v1189 = vunpack.c.l.b16 %v875
    %v1190 = vunpack.c.h.b16 %v875
    %v1191 = vunpack.c.l.b16 %v876
    %v1192 = vunpack.c.h.b16 %v876
    %v1193 = vunpack.c.l.b16 %v877
    %v1194 = vunpack.c.h.b16 %v877
    %v1195 = vunpack.c.l.b16 %v878
    %v1196 = vunpack.c.l.b16 %v879
    %v1197 = vunpack.c.h.b16 %v879
    %v1198 = vunpack.c.l.b16 %v880
    %v1199 = vunpack.c.h.b16 %v880
    %v1200 = vunpack.c.l.b16 %v881
    %v1201 = vunpack.c.h.b16 %v881
    %v1202 = vunpack.c.l.b16 %v882
    %v1203 = vunpack.c.l.b16 %v883
    %v1204 = vunpack.c.h.b16 %v883
    %v1205 = vunpack.c.l.b16 %v884
    %v1206 = vunpack.c.h.b16 %v884
    %v1207 = vunpack.c.l.b16 %v885
    %v1208 = vunpack.c.h.b16 %v885
    %v1209 = vunpack.c.l.b16 %v886
    %v1210 = vunpack.c.l.b16 %v887
    %v1211 = vunpack.c.h.b16 %v887
    %v1212 = vunpack.c.l.b16 %v888
    %v1213 = vunpack.c.h.b16 %v888
    %v1214 = vunpack.c.l.b16 %v889
    %v1215 = vunpack.c.h.b16 %v889
    %v1216 = vunpack.c.l.b16 %v890
    %v1217 = vunpack.c.l.b16 %v891
    %v1218 = vunpack.c.h.b16 %v891
    %v1219 = vunpack.c.l.b16 %v892
    %v1220 = vunpack.c.h.b16 %v892
    %v1221 = vunpack.c.l.b16 %v893
    %v1222 = vunpack.c.h.b16 %v893
    %v1223 = vunpack.c.l.b16 %v894
    %v1224 = vunpack.c.l.b16 %v895
    %v1225 = vunpack.c.h.b16 %v895
    %v1226 = vunpack.c.l.b16 %v896
    %v1227 = vunpack.c.h.b16 %v896
    %v1228 = vunpack.c.l.b16 %v897
    %v1229 = vunpack.c.h.b16 %v897
    %v1230 = vunpack.c.l.b16 %v898
    %v1231 = vunpack.c.l.b16 %v899
    %v1232 = vunpack.c.h.b16 %v899
    %v1233 = vunpack.c.l.b16 %v900
    %v1234 = vunpack.c.h.b16 %v900
    %v1235 = vunpack.c.l.b16 %v901
    %v1236 = vunpack.c.h.b16 %v901
    %v1237 = vunpack.c.l.b16 %v902
    %v1238 = vunpack.c.l.b16 %v903
    %v1239 = vunpack.c.h.b16 %v903
    %v1240 = vunpack.c.l.b16 %v904
    %v1241 = vunpack.c.h.b16 %v904
    %v1242 = vunpack.c.l.b16 %v905
    %v1243 = vunpack.c.h.b16 %v905
    %v1244 = vunpack.c.l.b16 %v906
    %v1245 = vunpack.c.l.b16 %v907
    %v1246 = vunpack.c.h.b16 %v907
    %v1247 = vunpack.c.l.b16 %v908
    %v1248 = vunpack.c.h.b16 %v908
    %v1249 = vunpack.c.l.b16 %v909
    %v1250 = vunpack.c.h.b16 %v909
    %v1251 = vunpack.c.l.b16 %v910
    %v1252 = vunpack.c.l.b16 %v911
    %v1253 = vunpack.c.h.b16 %v911
    %v1254 = vunpack.c.l.b16 %v912
    %v1255 = vunpack.c.h.b16 %v912
    %v1256 = vunpack.c.l.b16 %v913
    %v1257 = vunpack.c.h.b16 %v913
    %v1258 = vunpack.c.l.b16 %v914
    %v1259 = vunpack.c.l.b16 %v915
    %v1260 = vunpack.c.h.b16 %v915
    %v1261 = vunpack.c.l.b16 %v916
    %v1262 = vunpack.c.h.b16 %v916
    %v1263 = vunpack.c.l.b16 %v917
    %v1264 = vunpack.c.h.b16 %v917
    %v1265 = vunpack.c.l.b16 %v918
    %v1266 = vunpack.c.l.b16 %v919
    %v1267 = vunpack.c.h.b16 %v919
    %v1268 = vunpack.c.l.b16 %v920
    %v1269 = vunpack.c.h.b16 %v920
    %v1270 = vunpack.c.l.b16 %v921
    %v1271 = vunpack.c.h.b16 %v921
    %v1272 = vunpack.c.l.b16 %v922
    %v1273 = vunpack.c.l.b16 %v923
    %v1274 = vunpack.c.h.b16 %v923
    %v1275 = vunpack.c.l.b16 %v924
    %v1276 = vunpack.c.h.b16 %v924
    %v1277 = vunpack.c.l.b16 %v925
    %v1278 = vunpack.c.h.b16 %v925
    %v1279 = vunpack.c.l.b16 %v926
    %v1280 = vunpack.c.l.b16 %v927
    %v1281 = vunpack.c.h.b16 %v927
    %v1282 = vunpack.c.l.b16 %v928
    %v1283 = vunpack.c.h.b16 %v928
    %v1284 = vunpack.c.l.b16 %v929
    %v1285 = vunpack.c.h.b16 %v929
    %v1286 = vunpack.c.l.b16 %v930
    %v1287 = vunpack.c.l.b16 %v931
    %v1288 = vunpack.c.h.b16 %v931
    %v1289 = vunpack.c.l.b16 %v932
    %v1290 = vunpack.c.h.b16 %v932
    %v1291 = vunpack.c.l.b16 %v933
    %v1292 = vunpack.c.h.b16 %v933
    %v1293 = vunpack.c.l.b16 %v934
    %v1294 = vunpack.c.l.b16 %v935
    %v1295 = vunpack.c.h.b16 %v935
    %v1296 = vunpack.c.l.b16 %v936
    %v1297 = vunpack.c.h.b16 %v936
    %v1298 = vunpack.c.l.b16 %v937
    %v1299 = vunpack.c.h.b16 %v937
    %v1300 = vunpack.c.l.b16 %v938
    %v1301 = vunpack.c.l.b16 %v939
    %v1302 = vunpack.c.h.b16 %v939
    %v1303 = vunpack.c.l.b16 %v940
    %v1304 = vunpack.c.h.b16 %v940
    %v1305 = vunpack.c.l.b16 %v941
    %v1306 = vunpack.c.h.b16 %v941
    %v1307 = vunpack.c.l.b16 %v942
    %v1308 = vunpack.c.l.b16 %v943
    %v1309 = vunpack.c.h.b16 %v943
    %v1310 = vunpack.c.l.b16 %v944
    %v1311 = vunpack.c.h.b16 %v944
    %v1312 = vunpack.c.l.b16 %v945
    %v1313 = vunpack.c.h.b16 %v945
    %v1314 = vunpack.c.l.b16 %v946
    %v1315 = vunpack.c.l.b16 %v947
    %v1316 = vunpack.c.h.b16 %v947
    %v1317 = vunpack.c.l.b16 %v948
    %v1318 = vunpack.c.h.b16 %v948
    %v1319 = vunpack.c.l.b16 %v949
    %v1320 = vunpack.c.h.b16 %v949
    %v1321 = vunpack.c.l.b16 %v950
    %v1322 = vunpack.c.l.b16 %v951
    %v1323 = vunpack.c.h.b16 %v951
    %v1324 = vunpack.c.l.b16 %v952
    %v1325 = vunpack.c.h.b16 %v952
    %v1326 = vunpack.c.l.b16 %v953
    %v1327 = vunpack.c.h.b16 %v953
    %v1328 = vunpack.c.l.b16 %v954
    %v1329 = vunpack.c.l.b16 %v955
    %v1330 = vunpack.c.h.b16 %v955
    %v1331 = vunpack.c.l.b16 %v956
    %v1332 = vunpack.c.h.b16 %v956
    %v1333 = vunpack.c.l.b16 %v957
    %v1334 = vunpack.c.h.b16 %v957
    %v1335 = vunpack.c.l.b16 %v958
    %v1336 = vunpack.c.l.b16 %v959
    %v1337 = vunpack.c.h.b16 %v959
    %v1338 = vunpack.c.l.b16 %v960
    %v1339 = vunpack.c.h.b16 %v960
    %v1340 = vunpack.c.l.b16 %v961
    %v1341 = vunpack.c.h.b16 %v961
    %v1342 = vunpack.c.l.b16 %v962
    %v1343 = vunpack.c.l.b16 %v963
    %v1344 = vunpack.c.h.b16 %v963
    %v1345 = vunpack.c.l.b16 %v964
    %v1346 = vunpack.c.h.b16 %v964
    %v1347 = vunpack.c.l.b16 %v965
    %v1348 = vunpack.c.h.b16 %v965
    %v1349 = vunpack.c.l.b16 %v966
    %v1350 = vunpack.c.l.b16 %v967
    %v1351 = vunpack.c.h.b16 %v967
    %v1352 = vunpack.c.l.b16 %v968
    %v1353 = vunpack.c.h.b16 %v968
    %v1354 = vunpack.c.l.b16 %v969
    %v1355 = vunpack.c.h.b16 %v969
    %v1356 = vunpack.c.l.b16 %v970
    %v1357 = vunpack.c.l.b16 %v971
    %v1358 = vunpack.c.h.b16 %v971
    %v1359 = vunpack.c.l.b16 %v972
    %v1360 = vunpack.c.h.b16 %v972
    %v1361 = vunpack.c.l.b16 %v973
    %v1362 = vunpack.c.h.b16 %v973
    %v1363 = vunpack.c.l.b16 %v974
    %v1364 = vpack.c.b16 %v1147, %v1140
    %v1365 = vpack.c.b16 %v1148, %v1141
    %v1366 = vpack.c.b16 %v1149, %v1142
    %v1367 = vpack.c.b16 %v1150, %v1143
    %v1368 = vpack.c.b16 %v1151, %v1144
    %v1369 = vpack.c.b16 %v1152, %v1145
    %v1370 = vpack.c.b16 %v1153, %v1146
    %v1371 = vpack.c.b16 %v1161, %v1154
    %v1372 = vpack.c.b16 %v1162, %v1155
    %v1373 = vpack.c.b16 %v1163, %v1156
    %v1374 = vpack.c.b16 %v1164, %v1157
    %v1375 = vpack.c.b16 %v1165, %v1158
    %v1376 = vpack.c.b16 %v1166, %v1159
    %v1377 = vpack.c.b16 %v1167, %v1160
    %v1378 = vpack.c.b16 %v1175, %v1168
    %v1379 = vpack.c.b16 %v1176, %v1169
    %v1380 = vpack.c.b16 %v1177, %v1170
    %v1381 = vpack.c.b16 %v1178, %v1171
    %v1382 = vpack.c.b16 %v1179, %v1172
    %v1383 = vpack.c.b16 %v1180, %v1173
    %v1384 = vpack.c.b16 %v1181, %v1174
    %v1385 = vpack.c.b16 %v1189, %v1182
    %v1386 = vpack.c.b16 %v1190, %v1183
    %v1387 = vpack.c.b16 %v1191, %v1184
    %v1388 = vpack.c.b16 %v1192, %v1185
    %v1389 = vpack.c.b16 %v1193, %v1186
    %v1390 = vpack.c.b16 %v1194, %v1187
    %v1391 = vpack.c.b16 %v1195, %v1188
    %v1392 = vpack.c.b16 %v1203, %v1196
    %v1393 = vpack.c.b16 %v1204, %v1197
    %v1394 = vpack.c.b16 %v1205, %v1198
    %v1395 = vpack.c.b16 %v1206, %v1199
    %v1396 = vpack.c.b16 %v1207, %v1200
    %v1397 = vpack.c.b16 %v1208, %v1201
    %v1398 = vpack.c.b16 %v1209, %v1202
    %v1399 = vpack.c.b16 %v1217, %v1210
    %v1400 = vpack.c.b16 %v1218, %v1211
    %v1401 = vpack.c.b16 %v1219, %v1212
    %v1402 = vpack.c.b16 %v1220, %v1213
    %v1403 = vpack.c.b16 %v1221, %v1214
    %v1404 = vpack.c.b16 %v1222, %v1215
    %v1405 = vpack.c.b16 %v1223, %v1216
    %v1406 = vpack.c.b16 %v1231, %v1224
    %v1407 = vpack.c.b16 %v1232, %v1225
    %v1408 = vpack.c.b16 %v1233, %v1226
    %v1409 = vpack.c.b16 %v1234, %v1227
    %v1410 = vpack.c.b16 %v1235, %v1228
    %v1411 = vpack.c.b16 %v1236, %v1229
    %v1412 = vpack.c.b16 %v1237, %v1230
    %v1413 = vpack.c.b16 %v1245, %v1238
    %v1414 = vpack.c.b16 %v1246, %v1239
    %v1415 = vpack.c.b16 %v1247, %v1240
    %v1416 = vpack.c.b16 %v1248, %v1241
    %v1417 = vpack.c.b16 %v1249, %v1242
    %v1418 = vpack.c.b16 %v1250, %v1243
    %v1419 = vpack.c.b16 %v1251, %v1244
    %v1420 = vpack.c.b16 %v1259, %v1252
    %v1421 = vpack.c.b16 %v1260, %v1253
    %v1422 = vpack.c.b16 %v1261, %v1254
    %v1423 = vpack.c.b16 %v1262, %v1255
    %v1424 = vpack.c.b16 %v1263, %v1256
    %v1425 = vpack.c.b16 %v1264, %v1257
    %v1426 = vpack.c.b16 %v1265, %v1258
    %v1427 = vpack.c.b16 %v1273, %v1266
    %v1428 = vpack.c.b16 %v1274, %v1267
    %v1429 = vpack.c.b16 %v1275, %v1268
    %v1430 = vpack.c.b16 %v1276, %v1269
    %v1431 = vpack.c.b16 %v1277, %v1270
    %v1432 = vpack.c.b16 %v1278, %v1271
    %v1433 = vpack.c.b16 %v1279, %v1272
    %v1434 = vpack.c.b16 %v1287, %v1280
    %v1435 = vpack.c.b16 %v1288, %v1281
    %v1436 = vpack.c.b16 %v1289, %v1282
    %v1437 = vpack.c.b16 %v1290, %v1283
    %v1438 = vpack.c.b16 %v1291, %v1284
    %v1439 = vpack.c.b16 %v1292, %v1285
    %v1440 = vpack.c.b16 %v1293, %v1286
    %v1441 = vpack.c.b16 %v1301, %v1294
    %v1442 = vpack.c.b16 %v1302, %v1295
    %v1443 = vpack.c.b16 %v1303, %v1296
    %v1444 = vpack.c.b16 %v1304, %v1297
    %v1445 = vpack.c.b16 %v1305, %v1298
    %v1446 = vpack.c.b16 %v1306, %v1299
    %v1447 = vpack.c.b16 %v1307, %v1300
    %v1448 = vpack.c.b16 %v1315, %v1308
    %v1449 = vpack.c.b16 %v1316, %v1309
    %v1450 = vpack.c.b16 %v1317, %v1310
    %v1451 = vpack.c.b16 %v1318, %v1311
    %v1452 = vpack.c.b16 %v1319, %v1312
    %v1453 = vpack.c.b16 %v1320, %v1313
    %v1454 = vpack.c.b16 %v1321, %v1314
    %v1455 = vpack.c.b16 %v1329, %v1322
    %v1456 = vpack.c.b16 %v1330, %v1323
    %v1457 = vpack.c.b16 %v1331, %v1324
    %v1458 = vpack.c.b16 %v1332, %v1325
    %v1459 = vpack.c.b16 %v1333, %v1326
    %v1460 = vpack.c.b16 %v1334, %v1327
    %v1461 = vpack.c.b16 %v1335, %v1328
    %v1462 = vpack.c.b16 %v1343, %v1336
    %v1463 = vpack.c.b16 %v1344, %v1337
    %v1464 = vpack.c.b16 %v1345, %v1338
    %v1465 = vpack.c.b16 %v1346, %v1339
    %v1466 = vpack.c.b16 %v1347, %v1340
    %v1467 = vpack.c.b16 %v1348, %v1341
    %v1468 = vpack.c.b16 %v1349, %v1342
    %v1469 = vpack.c.b16 %v1357, %v1350
    %v1470 = vpack.c.b16 %v1358, %v1351
    %v1471 = vpack.c.b16 %v1359, %v1352
    %v1472 = vpack.c.b16 %v1360, %v1353
    %v1473 = vpack.c.b16 %v1361, %v1354
    %v1474 = vpack.c.b16 %v1362, %v1355
    %v1475 = vpack.c.b16 %v1363, %v1356
    %1588 = vmatprep.subr.bf16.mxu0 %v1365
    %1589 = vmatpush1.bf16.msra.mxu0 %v1364
    %1590 = vmatprep.subr.bf16.mxu0 %v1372
    %1591 = vmatpush1.bf16.msra.mxu0 %v1371
    %1592 = vmatprep.subr.bf16.mxu0 %v1379
    %1593 = vmatpush1.bf16.msra.mxu0 %v1378
    %1594 = vmatprep.subr.bf16.mxu0 %v1386
    %1595 = vmatpush1.bf16.msra.mxu0 %v1385
    %1596 = vmatprep.subr.bf16.mxu0 %v1393
    %1597 = vmatpush1.bf16.msra.mxu0 %v1392
    %1598 = vmatprep.subr.bf16.mxu0 %v1400
    %1599 = vmatpush1.bf16.msra.mxu0 %v1399
    %1600 = vmatprep.subr.bf16.mxu0 %v1407
    %1601 = vmatpush1.bf16.msra.mxu0 %v1406
    %1602 = vmatprep.subr.bf16.mxu0 %v1414
    %1603 = vmatpush1.bf16.msra.mxu0 %v1413
    %1604 = vmatprep.subr.bf16.mxu0 %v1421
    %1605 = vmatpush1.bf16.msra.mxu0 %v1420
    %1606 = vmatprep.subr.bf16.mxu0 %v1428
    %1607 = vmatpush1.bf16.msra.mxu0 %v1427
    %1608 = vmatprep.subr.bf16.mxu0 %v1435
    %1609 = vmatpush1.bf16.msra.mxu0 %v1434
    %1610 = vmatprep.subr.bf16.mxu0 %v1442
    %1611 = vmatpush1.bf16.msra.mxu0 %v1441
    %1612 = vmatprep.subr.bf16.mxu0 %v1449
    %1613 = vmatpush1.bf16.msra.mxu0 %v1448
    %1614 = vmatprep.subr.bf16.mxu0 %v1456
    %1615 = vmatpush1.bf16.msra.mxu0 %v1455
    %1616 = vmatprep.subr.bf16.mxu0 %v1463
    %1617 = vmatpush1.bf16.msra.mxu0 %v1462
    %1618 = vmatprep.subr.bf16.mxu0 %v1470
    %1619 = vmatpush1.bf16.msra.mxu0 %v1469
    %1620 = vmatprep.mubr.bf16.mxu0 %v846
    %1621 = vmatmul.mubr.bf16.gmra.mrb[0].mxu0 %v845
    %v1622 = vpop.f32.mrb[0].mxu0
    %v1623 = vadd.f32 %v980, %v1622
    %v1624 = vpop.f32.mrb[0].mxu0
    %v1625 = vadd.f32 %v984, %v1624
    %v1626 = vpop.f32.mrb[0].mxu0
    %v1627 = vadd.f32 %v980, %v1626
    %v1628 = vpop.f32.mrb[0].mxu0
    %v1629 = vadd.f32 %v984, %v1628
    %1630 = vdwg.mxu0
    %1631 = vmatprep.subr.bf16.mxu0 %v1367
    %1632 = vmatpush1.bf16.msra.mxu0 %v1366
    %1633 = vmatprep.subr.bf16.mxu0 %v1374
    %1634 = vmatpush1.bf16.msra.mxu0 %v1373
    %1635 = vmatprep.subr.bf16.mxu0 %v1381
    %1636 = vmatpush1.bf16.msra.mxu0 %v1380
    %1637 = vmatprep.subr.bf16.mxu0 %v1388
    %1638 = vmatpush1.bf16.msra.mxu0 %v1387
    %1639 = vmatprep.subr.bf16.mxu0 %v1395
    %1640 = vmatpush1.bf16.msra.mxu0 %v1394
    %1641 = vmatprep.subr.bf16.mxu0 %v1402
    %1642 = vmatpush1.bf16.msra.mxu0 %v1401
    %1643 = vmatprep.subr.bf16.mxu0 %v1409
    %1644 = vmatpush1.bf16.msra.mxu0 %v1408
    %1645 = vmatprep.subr.bf16.mxu0 %v1416
    %1646 = vmatpush1.bf16.msra.mxu0 %v1415
    %1647 = vmatprep.subr.bf16.mxu0 %v1423
    %1648 = vmatpush1.bf16.msra.mxu0 %v1422
    %1649 = vmatprep.subr.bf16.mxu0 %v1430
    %1650 = vmatpush1.bf16.msra.mxu0 %v1429
    %1651 = vmatprep.subr.bf16.mxu0 %v1437
    %1652 = vmatpush1.bf16.msra.mxu0 %v1436
    %1653 = vmatprep.subr.bf16.mxu0 %v1444
    %1654 = vmatpush1.bf16.msra.mxu0 %v1443
    %1655 = vmatprep.subr.bf16.mxu0 %v1451
    %1656 = vmatpush1.bf16.msra.mxu0 %v1450
    %1657 = vmatprep.subr.bf16.mxu0 %v1458
    %1658 = vmatpush1.bf16.msra.mxu0 %v1457
    %1659 = vmatprep.subr.bf16.mxu0 %v1465
    %1660 = vmatpush1.bf16.msra.mxu0 %v1464
    %1661 = vmatprep.subr.bf16.mxu0 %v1472
    %1662 = vmatpush1.bf16.msra.mxu0 %v1471
    %1663 = vmatprep.mubr.bf16.mxu0 %v846
    %1664 = vmatmul.mubr.bf16.gmra.mrb[0].mxu0 %v845
    %v1665 = vpop.f32.mrb[0].mxu0
    %v1666 = vadd.f32 %v988, %v1665
    %v1667 = vpop.f32.mrb[0].mxu0
    %v1668 = vadd.f32 %v992, %v1667
    %v1669 = vpop.f32.mrb[0].mxu0
    %v1670 = vadd.f32 %v988, %v1669
    %v1671 = vpop.f32.mrb[0].mxu0
    %v1672 = vadd.f32 %v992, %v1671
    %1673 = vdwg.mxu0
    %1674 = vmatprep.subr.bf16.mxu0 %v1369
    %1675 = vmatpush1.bf16.msra.mxu0 %v1368
    %1676 = vmatprep.subr.bf16.mxu0 %v1376
    %1677 = vmatpush1.bf16.msra.mxu0 %v1375
    %1678 = vmatprep.subr.bf16.mxu0 %v1383
    %1679 = vmatpush1.bf16.msra.mxu0 %v1382
    %1680 = vmatprep.subr.bf16.mxu0 %v1390
    %1681 = vmatpush1.bf16.msra.mxu0 %v1389
    %1682 = vmatprep.subr.bf16.mxu0 %v1397
    %1683 = vmatpush1.bf16.msra.mxu0 %v1396
    %1684 = vmatprep.subr.bf16.mxu0 %v1404
    %1685 = vmatpush1.bf16.msra.mxu0 %v1403
    %1686 = vmatprep.subr.bf16.mxu0 %v1411
    %1687 = vmatpush1.bf16.msra.mxu0 %v1410
    %1688 = vmatprep.subr.bf16.mxu0 %v1418
    %1689 = vmatpush1.bf16.msra.mxu0 %v1417
    %1690 = vmatprep.subr.bf16.mxu0 %v1425
    %1691 = vmatpush1.bf16.msra.mxu0 %v1424
    %1692 = vmatprep.subr.bf16.mxu0 %v1432
    %1693 = vmatpush1.bf16.msra.mxu0 %v1431
    %1694 = vmatprep.subr.bf16.mxu0 %v1439
    %1695 = vmatpush1.bf16.msra.mxu0 %v1438
    %1696 = vmatprep.subr.bf16.mxu0 %v1446
    %1697 = vmatpush1.bf16.msra.mxu0 %v1445
    %1698 = vmatprep.subr.bf16.mxu0 %v1453
    %1699 = vmatpush1.bf16.msra.mxu0 %v1452
    %1700 = vmatprep.subr.bf16.mxu0 %v1460
    %1701 = vmatpush1.bf16.msra.mxu0 %v1459
    %1702 = vmatprep.subr.bf16.mxu0 %v1467
    %1703 = vmatpush1.bf16.msra.mxu0 %v1466
    %1704 = vmatprep.subr.bf16.mxu0 %v1474
    %1705 = vmatpush1.bf16.msra.mxu0 %v1473
    %1706 = vmatprep.mubr.bf16.mxu0 %v846
    %1707 = vmatmul.mubr.bf16.gmra.mrb[0].mxu0 %v845
    %v1708 = vpop.f32.mrb[0].mxu0
    %v1709 = vadd.f32 %v996, %v1708
    %v1710 = vpop.f32.mrb[0].mxu0
    %v1711 = vadd.f32 %v1000, %v1710
    %v1712 = vpop.f32.mrb[0].mxu0
    %v1713 = vadd.f32 %v996, %v1712
    %v1714 = vpop.f32.mrb[0].mxu0
    %v1715 = vadd.f32 %v1000, %v1714
    %1716 = vdwg.mxu0
    %1717 = vmatprep.subr.bf16.mxu0 0
    %1718 = vmatpush1.bf16.msra.mxu0 %v1370
    %1719 = vmatprep.subr.bf16.mxu0 0
    %1720 = vmatpush1.bf16.msra.mxu0 %v1377
    %1721 = vmatprep.subr.bf16.mxu0 0
    %1722 = vmatpush1.bf16.msra.mxu0 %v1384
    %1723 = vmatprep.subr.bf16.mxu0 0
    %1724 = vmatpush1.bf16.msra.mxu0 %v1391
    %1725 = vmatprep.subr.bf16.mxu0 0
    %1726 = vmatpush1.bf16.msra.mxu0 %v1398
    %1727 = vmatprep.subr.bf16.mxu0 0
    %1728 = vmatpush1.bf16.msra.mxu0 %v1405
    %1729 = vmatprep.subr.bf16.mxu0 0
    %1730 = vmatpush1.bf16.msra.mxu0 %v1412
    %1731 = vmatprep.subr.bf16.mxu0 0
    %1732 = vmatpush1.bf16.msra.mxu0 %v1419
    %1733 = vmatprep.subr.bf16.mxu0 0
    %1734 = vmatpush1.bf16.msra.mxu0 %v1426
    %1735 = vmatprep.subr.bf16.mxu0 0
    %1736 = vmatpush1.bf16.msra.mxu0 %v1433
    %1737 = vmatprep.subr.bf16.mxu0 0
    %1738 = vmatpush1.bf16.msra.mxu0 %v1440
    %1739 = vmatprep.subr.bf16.mxu0 0
    %1740 = vmatpush1.bf16.msra.mxu0 %v1447
    %1741 = vmatprep.subr.bf16.mxu0 0
    %1742 = vmatpush1.bf16.msra.mxu0 %v1454
    %1743 = vmatprep.subr.bf16.mxu0 0
    %1744 = vmatpush1.bf16.msra.mxu0 %v1461
    %1745 = vmatprep.subr.bf16.mxu0 0
    %1746 = vmatpush1.bf16.msra.mxu0 %v1468
    %1747 = vmatprep.subr.bf16.mxu0 0
    %1748 = vmatpush1.bf16.msra.mxu0 %v1475
    %1749 = vmatprep.mubr.bf16.mxu0 %v846
    %1750 = vmatmul.mubr.bf16.gmra.mrb[0].mxu0 %v845
    %v1751 = vpop.f32.mrb[0].mxu0
    %v1752 = vadd.f32 %v1004, %v1751
    %v1753 = vpop.f32.mrb[0].mxu0
    %v1754 = vpop.f32.mrb[0].mxu0
    %v1755 = vadd.f32 %v1004, %v1754
    %v1756 = vpop.f32.mrb[0].mxu0
    %1757 = vdwg.mxu0
    %v1758 = vsub.f32 0.0, %v1623
    %v1759 = vsub.f32 0.0, %v1625
    %v1760 = vsub.f32 0.0, %v1666
    %v1761 = vsub.f32 0.0, %v1668
    %v1762 = vsub.f32 0.0, %v1709
    %v1763 = vsub.f32 0.0, %v1711
    %v1764 = vsub.f32 0.0, %v1752
    %v1765 = vsub.f32 0.0, %v1627
    %v1766 = vsub.f32 0.0, %v1629
    %v1767 = vsub.f32 0.0, %v1670
    %v1768 = vsub.f32 0.0, %v1672
    %v1769 = vsub.f32 0.0, %v1713
    %v1770 = vsub.f32 0.0, %v1715
    %v1771 = vsub.f32 0.0, %v1755
    %v1772 = vmul.f32 %v1758, 1.442695
    %v1773 = vpow.pop %v1772
    %v1774 = vmul.f32 %v1759, 1.442695
    %v1775 = vpow.pop %v1774
    %v1776 = vmul.f32 %v1760, 1.442695
    %v1777 = vpow.pop %v1776
    %v1778 = vmul.f32 %v1761, 1.442695
    %v1779 = vpow.pop %v1778
    %v1780 = vmul.f32 %v1762, 1.442695
    %v1781 = vpow.pop %v1780
    %v1782 = vmul.f32 %v1763, 1.442695
    %v1783 = vpow.pop %v1782
    %v1784 = vmul.f32 %v1764, 1.442695
    %v1785 = vpow.pop %v1784
    %v1786 = vmul.f32 %v1765, 1.442695
    %v1787 = vpow.pop %v1786
    %v1788 = vmul.f32 %v1766, 1.442695
    %v1789 = vpow.pop %v1788
    %v1790 = vmul.f32 %v1767, 1.442695
    %v1791 = vpow.pop %v1790
    %v1792 = vmul.f32 %v1768, 1.442695
    %v1793 = vpow.pop %v1792
    %v1794 = vmul.f32 %v1769, 1.442695
    %v1795 = vpow.pop %v1794
    %v1796 = vmul.f32 %v1770, 1.442695
    %v1797 = vpow.pop %v1796
    %v1798 = vmul.f32 %v1771, 1.442695
    %v1799 = vpow.pop %v1798
    %v1800 = vadd.f32 %v1773, 1.0
    %v1801 = vadd.f32 %v1775, 1.0
    %v1802 = vadd.f32 %v1777, 1.0
    %v1803 = vadd.f32 %v1779, 1.0
    %v1804 = vadd.f32 %v1781, 1.0
    %v1805 = vadd.f32 %v1783, 1.0
    %v1806 = vadd.f32 %v1785, 1.0
    %v1807 = vadd.f32 %v1787, 1.0
    %v1808 = vadd.f32 %v1789, 1.0
    %v1809 = vadd.f32 %v1791, 1.0
    %v1810 = vadd.f32 %v1793, 1.0
    %v1811 = vadd.f32 %v1795, 1.0
    %v1812 = vadd.f32 %v1797, 1.0
    %v1813 = vadd.f32 %v1799, 1.0
    %v1814 = vrcp.pop %v1800
    %v1815 = vrcp.pop %v1801
    %v1816 = vrcp.pop %v1802
    %v1817 = vrcp.pop %v1803
    %v1818 = vrcp.pop %v1804
    %v1819 = vrcp.pop %v1805
    %v1820 = vrcp.pop %v1806
    %v1821 = vrcp.pop %v1807
    %v1822 = vrcp.pop %v1808
    %v1823 = vrcp.pop %v1809
    %v1824 = vrcp.pop %v1810
    %v1825 = vrcp.pop %v1811
    %v1826 = vrcp.pop %v1812
    %v1827 = vrcp.pop %v1813
    %v1828 = vpack.c.bf16 %v1821, %v1814
    %v1829 = vpack.c.bf16 %v1822, %v1815
    %v1830 = vpack.c.bf16 %v1823, %v1816
    %v1831 = vpack.c.bf16 %v1824, %v1817
    %v1832 = vpack.c.bf16 %v1825, %v1818
    %v1833 = vpack.c.bf16 %v1826, %v1819
    %v1834 = vpack.c.bf16 %v1827, %v1820
    %v1842 = vunpack.c.l.b16 %v1828
    %v1843 = vunpack.c.l.b16 %v1829
    %v1844 = vunpack.c.l.b16 %v1830
    %v1845 = vunpack.c.l.b16 %v1831
    %v1846 = vunpack.c.l.b16 %v1832
    %v1847 = vunpack.c.l.b16 %v1833
    %v1848 = vunpack.c.l.b16 %v1834
    %v1849 = vunpack.c.h.b16 %v1828
    %v1850 = vunpack.c.h.b16 %v1829
    %v1851 = vunpack.c.h.b16 %v1830
    %v1852 = vunpack.c.h.b16 %v1831
    %v1853 = vunpack.c.h.b16 %v1832
    %v1854 = vunpack.c.h.b16 %v1833
    %v1855 = vunpack.c.h.b16 %v1834
    %v1856 = vpack.c.b16 %v1843, %v1842
    %v1857 = vpack.c.b16 %v1845, %v1844
    %v1858 = vpack.c.b16 %v1847, %v1846
    %v1859 = vpack.c.b16 %v1848, %v1848
    %v1860 = vpack.c.b16 %v1850, %v1849
    %v1861 = vpack.c.b16 %v1852, %v1851
    %v1862 = vpack.c.b16 %v1854, %v1853
    %v1863 = vpack.c.b16 %v1855, %v1855
    %1872 = vst [vmem:[#allocation2] sm:$0xff] %v1856
    %1873 = vst [vmem:[#allocation2 + $0x8] sm:$0xff] %v1857
    %1874 = vst [vmem:[#allocation2 + $0x10] sm:$0xff] %v1858
    %vm1875 = vcmask 125952
    %1876 = vst.msk [vmem:[#allocation2 + $0x18] sm:$0xf] %vm1875, %v1859
    %1877 = vst [vmem:[#allocation2 + $0x1c] sm:$0xff] %v1860
    %1878 = vst [vmem:[#allocation2 + $0x24] sm:$0xff] %v1861
    %1879 = vst [vmem:[#allocation2 + $0x2c] sm:$0xff] %v1862
    %1880 = vst.msk [vmem:[#allocation2 + $0x34] sm:$0xf] %vm1875, %v1863
    // Predicated region
    $region22: #{autoencoder_forward.1} parent=1 // pred_check
      _
    $region23: #{autoencoder_forward.1} parent=1 // pred_check_branch
      %1882 = sbr.rel (0) target = $region25
    $region24: #{autoencoder_forward.1} parent=1 // pred_region
      %s1884 = ssub.s32 896, 896
      %1885 = vsyncadd [#allocation3], %s1884
      %s1886 = sshll.u32 [#allocation2], 4
      %s1887 = int_to_ptr.vmem [resolvable:$true] %s1886
      %1892 = dma.vmem_to_hbm [thread:$0]  %s1887, 896, %s5, [#allocation3], 448, 448, 28
    $region25: #{autoencoder_forward.1} parent=1 // pred_fallthru
      _
    // Predicated region
    $region26: #{autoencoder_forward.1} parent=1 // pred_check
      _
    $region27: #{autoencoder_forward.1} parent=1 // pred_check_branch
      %1894 = sbr.rel (0) target = $region29
    $region28: #{autoencoder_forward.1} parent=1 // pred_region
      %1895 = dma.done [#allocation3], 896
    $region29: #{autoencoder_forward.1} parent=1 // pred_fallthru
      _
    %1896 = vsyncpa [#allocation3], 1

</llo_original>
